<compile_context>
chip_gen: v7x
topology: tpu7x:2x2x1
jax: 0.10.0
libtpu: 0.0.40
codegen_flags: <defaults>
</compile_context>

<pallas_src>
import jax
import jax.numpy as jnp
from jax.experimental import pallas as pl
from jax.experimental.pallas import tpu as pltpu


# ----------------------------------------------------------------------------- helpers
def _round_up(n, m):
    return ((n + m - 1) // m) * m


def _pad_axis(a, axis, new_size):
    pad = [(0, 0)] * a.ndim
    pad[axis] = (0, new_size - a.shape[axis])
    return jnp.pad(a, pad)


def _pad_gates(a, axis, H, Hp):
    """`a` has 3*H ([r|z|n] PyTorch GRU order) along `axis`; re-lay as 3*Hp with each
    gate block zero-padded to Hp so in-kernel gate slicing stays at Hp boundaries."""
    r, z, n = jnp.split(a, 3, axis=axis)
    return jnp.concatenate([_pad_axis(g, axis, Hp) for g in (r, z, n)], axis=axis)


def _pick_tile(n, max_tile=512):
    if n <= max_tile:
        return n
    for c in (512, 256, 128, 64, 32, 16, 8):
        if n % c == 0:
            return c
    return n


# ----------------------------------------------------------------------------- kernel 1
def decoder_recurrence_kernel(
    gi_x_ref,    # (1, Bp, 3Hp)    emb-side GRU preactivation for step t (includes b_ih)
    keys_ref,    # (T_enc, Bp, Hp) precomputed attention keys (enc @ Wk + bk)
    val_ref,     # (T_enc, Bp, Hp) attention values (= encoder outputs)
    bias_ref,    # (T_enc, Bp, 1)  additive mask bias (-inf at pads, energy bias elsewhere)
    h0_ref,      # (Bp, Hp)        initial hidden
    w_h_ref,     # (Hp, 4Hp)       [Wq | Whh(r|z|n)]
    b_h_ref,     # (1, 4Hp)        [bq | bhh]
    we_ref,      # (1, Hp)         energy-layer weights
    wihc_ref,    # (Hp, 3Hp)       context-side GRU input weights
    hs_ref,      # (1, Bp, Hp)     out: hidden state after step t
    h_scratch,   # (Bp, Hp)        persistent hidden across grid steps
):
    t = pl.program_id(0)
    Hp = h0_ref.shape[1]

    @pl.when(t == 0)
    def _():
        h_scratch[...] = h0_ref[...]

    h = h_scratch[...]                                                     # (Bp, Hp)

    # One fused MXU matmul: query projection + hidden-side GRU gates.
    hproj = jnp.dot(h, w_h_ref[...], preferred_element_type=jnp.float32) + b_h_ref[...]
    q = hproj[:, :Hp]                                                      # (Bp, Hp)
    gh = hproj[:, Hp:]                                                     # (Bp, 3Hp)

    # ---- additive attention (keys hoisted to the wrapper) --------------------
    tanh_act = jnp.tanh(q[None, :, :] + keys_ref[...])                     # (T_enc, Bp, Hp)
    e = jnp.sum(tanh_act * we_ref[...][None], axis=-1, keepdims=True)      # (T_enc, Bp, 1)
    e = e + bias_ref[...]                                                  # mask + energy bias
    m = jnp.max(e, axis=0, keepdims=True)
    p = jnp.exp(e - m)
    w = p * pl.reciprocal(jnp.sum(p, axis=0, keepdims=True), approx=True)  # softmax over T_enc
    context = jnp.sum(w * val_ref[...], axis=0)                            # (Bp, Hp)

    # ---- GRU cell (PyTorch gate order r, z, n) -------------------------------
    gi = gi_x_ref[0] + jnp.dot(context, wihc_ref[...],
                               preferred_element_type=jnp.float32)         # (Bp, 3Hp)
    r = jax.nn.sigmoid(gi[:, :Hp] + gh[:, :Hp])
    z = jax.nn.sigmoid(gi[:, Hp:2 * Hp] + gh[:, Hp:2 * Hp])
    n = jnp.tanh(gi[:, 2 * Hp:] + r * gh[:, 2 * Hp:])
    h_new = (1.0 - z) * n + z * h                                          # (Bp, Hp)

    h_scratch[...] = h_new
    hs_ref[...] = h_new[None]


# ----------------------------------------------------------------------------- kernel 2
def output_projection_kernel(h_ref, w_ref, b_ref, o_ref):
    o_ref[...] = (jnp.dot(h_ref[...], w_ref[...], preferred_element_type=jnp.float32)
                  + b_ref[...])


# ----------------------------------------------------------------------------- wrapper
def attention_decoder_forward(params, inputs, encoder_output, encoder_mask, hidden):
    """inputs (T_dec, B) int32; encoder_output (T_enc, B, H); encoder_mask (T_enc, B);
    hidden (1, B, H). Returns (logits (T_dec, B, V), hidden (1, B, H))."""
    T_dec, B = inputs.shape
    T_enc, _, H = encoder_output.shape
    V = params['wout'].shape[1]

    Bp = _round_up(B, 8)
    Hp = _round_up(H, 128)
    Vp = _round_up(V, 128)
    f32 = jnp.float32

    enc = encoder_output.astype(f32)

    # ---- step-invariant precompute (plain XLA, done once) --------------------
    keys = jnp.einsum('tbh,hd->tbd', enc, params['wk']) + params['bk']        # (T_enc, B, H)
    embeddings = params['emb'][inputs]                                         # (T_dec, B, E) gather
    gi_x = jnp.einsum('tbe,eg->tbg', embeddings, params['wih_e']) + params['bih']  # (T_dec, B, 3H)
    bias = jnp.where(encoder_mask != 0, -jnp.inf, params['be'][0, 0]).astype(f32)  # (T_enc, B)

    # ---- pad to (8,128)-friendly shapes (zero padding is exactly neutral) ----
    keys_p = _pad_axis(_pad_axis(keys, 1, Bp), 2, Hp)                          # (T_enc, Bp, Hp)
    enc_p = _pad_axis(_pad_axis(enc, 1, Bp), 2, Hp)                            # (T_enc, Bp, Hp)
    bias_p = _pad_axis(bias, 1, Bp)[:, :, None]                                # (T_enc, Bp, 1)
    gi_x_p = _pad_axis(_pad_gates(gi_x, 2, H, Hp), 1, Bp)                      # (T_dec, Bp, 3Hp)
    h0_p = _pad_axis(_pad_axis(hidden[0].astype(f32), 0, Bp), 1, Hp)           # (Bp, Hp)

    wq_p = _pad_axis(_pad_axis(params['wq'], 0, Hp), 1, Hp)
    bq_p = _pad_axis(params['bq'], 1, Hp)
    whh_p = _pad_gates(_pad_axis(params['whh'], 0, Hp), 1, H, Hp)
    bhh_p = _pad_gates(params['bhh'], 1, H, Hp)
    w_h = jnp.concatenate([wq_p, whh_p], axis=1)                               # (Hp, 4Hp)
    b_h = jnp.concatenate([bq_p, bhh_p], axis=1)                               # (1, 4Hp)

    we_p = _pad_axis(params['we'], 1, Hp)                                      # (1, Hp)
    wihc_p = _pad_gates(_pad_axis(params['wih_c'], 0, Hp), 1, H, Hp)           # (Hp, 3Hp)
    wout_p = _pad_axis(_pad_axis(params['wout'], 0, Hp), 1, Vp)                # (Hp, Vp)
    bout_p = _pad_axis(params['bout'], 1, Vp)                                  # (1, Vp)

    # ---- kernel 1: sequential recurrence over decoder steps ------------------
    # Grid-invariant operands stay resident in VMEM (single-buffered, no per-step DMA).
    resident = lambda: pl.BlockSpec(memory_space=pltpu.MemorySpace.VMEM)

    grid_spec = pltpu.PrefetchScalarGridSpec(
        num_scalar_prefetch=0,
        grid=(T_dec,),
        in_specs=[
            pl.BlockSpec((1, Bp, 3 * Hp), lambda t: (t, 0, 0)),   # gi_x: per-step, pipelined
            resident(),   # keys
            resident(),   # values (encoder output)
            resident(),   # mask bias
            resident(),   # h0
            resident(),   # fused hidden-side weights
            resident(),   # fused hidden-side biases
            resident(),   # energy weights
            resident(),   # context-side GRU input weights
        ],
        out_specs=pl.BlockSpec((1, Bp, Hp), lambda t: (t, 0, 0)),
        scratch_shapes=[pltpu.VMEM((Bp, Hp), jnp.float32)],
    )

    hs = pl.pallas_call(
        decoder_recurrence_kernel,
        out_shape=jax.ShapeDtypeStruct((T_dec, Bp, Hp), jnp.float32),
        grid_spec=grid_spec,
        compiler_params=pltpu.CompilerParams(
            dimension_semantics=("arbitrary",),    # true recurrence over decoder steps
            vmem_limit_bytes=64 << 20),
    )(gi_x_p, keys_p, enc_p, bias_p, h0_p, w_h, b_h, we_p, wihc_p)

    # ---- kernel 2: one large, fully parallel vocab projection ----------------
    M = T_dec * Bp
    tm = _pick_tile(M)
    tn = _pick_tile(Vp)
    hs_flat = hs.reshape(M, Hp)

    logits_flat = pl.pallas_call(
        output_projection_kernel,
        out_shape=jax.ShapeDtypeStruct((M, Vp), jnp.float32),
        grid_spec=pltpu.PrefetchScalarGridSpec(
            num_scalar_prefetch=0,
            grid=(M // tm, Vp // tn),
            in_specs=[
                pl.BlockSpec((tm, Hp), lambda i, j: (i, 0)),
                pl.BlockSpec((Hp, tn), lambda i, j: (0, j)),
                pl.BlockSpec((1, tn), lambda i, j: (0, j)),
            ],
            out_specs=pl.BlockSpec((tm, tn), lambda i, j: (i, j)),
        ),
        compiler_params=pltpu.CompilerParams(
            dimension_semantics=("parallel", "parallel"),
            vmem_limit_bytes=64 << 20),
    )(hs_flat, wout_p, bout_p)

    logits = logits_flat.reshape(T_dec, Bp, Vp)[:, :B, :V]
    h_final = hs[T_dec - 1, :B, :H][None]
    return logits, h_final


# ----------------------------------------------------------------------------- params / reference
def init_params(key, vocab_size, emb_dim, hidden_dim):
    ks = jax.random.split(key, 16)
    H, E, V = hidden_dim, emb_dim, vocab_size
    u = lambda k, shape, b: jax.random.uniform(k, shape, jnp.float32, -b, b)
    sH = 1.0 / jnp.sqrt(H)
    return {
        'emb':   jax.random.normal(ks[0], (V, E), jnp.float32),
        'wq':    u(ks[1], (H, H), sH), 'bq': u(ks[2], (1, H), sH),
        'wk':    u(ks[3], (H, H), sH), 'bk': u(ks[4], (1, H), sH),
        'we':    u(ks[5], (1, H), sH), 'be': u(ks[6], (1, 1), sH),
        'wih_e': u(ks[7], (E, 3 * H), sH), 'wih_c': u(ks[8], (H, 3 * H), sH),
        'bih':   u(ks[9], (1, 3 * H), sH),
        'whh':   u(ks[10], (H, 3 * H), sH), 'bhh': u(ks[11], (1, 3 * H), sH),
        'wout':  u(ks[12], (H, V), sH), 'bout': u(ks[13], (1, V), sH),
    }


def ref_forward(params, inputs, enc, mask, hidden):
    """Pure-JAX reference mirroring the PyTorch module."""
    emb = params['emb'][inputs]
    h = hidden[0]
    H = h.shape[1]
    maskb = (mask != 0)[:, :, None]
    outs = []
    for t in range(inputs.shape[0]):
        q = h @ params['wq'] + params['bq'][0]
        k = jnp.einsum('tbh,hd->tbd', enc, params['wk']) + params['bk'][0]
        th = jnp.tanh(q[None] + k)
        f = jnp.sum(th * params['we'][0], -1, keepdims=True) + params['be'][0, 0]
        f = jnp.where(maskb, -jnp.inf, f)
        w = jax.nn.softmax(f, axis=0)
        ctx = jnp.sum(w * enc, 0)
        gi = emb[t] @ params['wih_e'] + ctx @ params['wih_c'] + params['bih'][0]
        gh = h @ params['whh'] + params['bhh'][0]
        r = jax.nn.sigmoid(gi[:, :H] + gh[:, :H])
        z = jax.nn.sigmoid(gi[:, H:2 * H] + gh[:, H:2 * H])
        n = jnp.tanh(gi[:, 2 * H:] + r * gh[:, 2 * H:])
        h = (1.0 - z) * n + z * h
        outs.append(h @ params['wout'] + params['bout'][0])
    return jnp.stack(outs, 0), h[None]


if __name__ == "__main__":
    VOCAB, E, H = 64, 16, 32
    T_DEC, T_ENC, B = 6, 8, 4

    key = jax.random.PRNGKey(0)
    kp, ki, ke, kh = jax.random.split(key, 4)

    params = init_params(kp, VOCAB, E, H)
    inputs = jax.random.randint(ki, (T_DEC, B), 0, VOCAB, dtype=jnp.int32)
    encoder_output = jax.random.normal(ke, (T_ENC, B, H), jnp.float32)
    encoder_mask = jnp.zeros((T_ENC, B), jnp.int32).at[-2:, 0].set(1)  # pad tail of batch 0
    hidden = 0.1 * jax.random.normal(kh, (1, B, H), jnp.float32)

    logits, h_out = attention_decoder_forward(params, inputs, encoder_output,
                                              encoder_mask, hidden)
    jax.block_until_ready((logits, h_out))

    ref_logits, ref_h = ref_forward(params, inputs, encoder_output, encoder_mask, hidden)
    assert logits.shape == (T_DEC, B, VOCAB) and h_out.shape == (1, B, H)
    assert jnp.allclose(logits, ref_logits, rtol=1e-2, atol=1e-2)
    assert jnp.allclose(h_out, ref_h, rtol=1e-2, atol=1e-2)

    print("KERNEL_OK")
</pallas_src>

<mosaic_0001>
module attributes {stable_mosaic.version = 11 : i64} {
  func.func @decoder_recurrence_kernel(%arg0: i32, %arg1: memref<1x8x384xf32, #tpu.memory_space<vmem>>, %arg2: memref<8x8x128xf32, #tpu.memory_space<vmem>>, %arg3: memref<8x8x128xf32, #tpu.memory_space<vmem>>, %arg4: memref<8x8x1xf32, #tpu.memory_space<vmem>>, %arg5: memref<8x128xf32, #tpu.memory_space<vmem>>, %arg6: memref<128x512xf32, #tpu.memory_space<vmem>>, %arg7: memref<1x512xf32, #tpu.memory_space<vmem>>, %arg8: memref<1x128xf32, #tpu.memory_space<vmem>>, %arg9: memref<128x384xf32, #tpu.memory_space<vmem>>, %arg10: memref<1x8x128xf32, #tpu.memory_space<vmem>>, %arg11: memref<8x128xf32, #tpu.memory_space<vmem>>) attributes {dimension_semantics = [#tpu.dimension_semantics<arbitrary>], iteration_bounds = array<i64: 6>, scalar_prefetch = 0 : i64, scratch_operands = 1 : i64, tpu.core_type = #tpu.core_type<tc>, window_params = [{transform_indices = @transform_0, window_bounds = array<i64: 1, 8, 384>}, {pipeline_mode = #tpu.pipeline_mode<synchronous>, transform_indices = @transform_1, window_bounds = array<i64: 8, 8, 128>}, {pipeline_mode = #tpu.pipeline_mode<synchronous>, transform_indices = @transform_2, window_bounds = array<i64: 8, 8, 128>}, {pipeline_mode = #tpu.pipeline_mode<synchronous>, transform_indices = @transform_3, window_bounds = array<i64: 8, 8, 1>}, {pipeline_mode = #tpu.pipeline_mode<synchronous>, transform_indices = @transform_4, window_bounds = array<i64: 8, 128>}, {pipeline_mode = #tpu.pipeline_mode<synchronous>, transform_indices = @transform_5, window_bounds = array<i64: 128, 512>}, {pipeline_mode = #tpu.pipeline_mode<synchronous>, transform_indices = @transform_6, window_bounds = array<i64: 1, 512>}, {pipeline_mode = #tpu.pipeline_mode<synchronous>, transform_indices = @transform_7, window_bounds = array<i64: 1, 128>}, {pipeline_mode = #tpu.pipeline_mode<synchronous>, transform_indices = @transform_8, window_bounds = array<i64: 128, 384>}, {transform_indices = @transform_9, window_bounds = array<i64: 1, 8, 128>}]} {
    %c0_i32 = arith.constant 0 : i32
    %0 = arith.cmpi eq, %arg0, %c0_i32 : i32
    %1 = arith.extui %0 : i1 to i32
    %c0_i32_0 = arith.constant 0 : i32
    %2 = arith.cmpi ne, %1, %c0_i32_0 : i32
    scf.if %2 {
      %c0_35 = arith.constant 0 : index
      %c0_36 = arith.constant 0 : index
      %72 = vector.load %arg5[%c0_35, %c0_36] : memref<8x128xf32, #tpu.memory_space<vmem>>, vector<8x128xf32>
      %c0_37 = arith.constant 0 : index
      %c0_38 = arith.constant 0 : index
      %73 = vector.load %arg11[%c0_37, %c0_38] : memref<8x128xf32, #tpu.memory_space<vmem>>, vector<8x128xf32>
      tpu.vector_store %arg11[%c0_37, %c0_38], %72 {strides = array<i32>} : memref<8x128xf32, #tpu.memory_space<vmem>>, vector<8x128xf32>,
    } else {
    }
    %c0 = arith.constant 0 : index
    %c0_1 = arith.constant 0 : index
    %3 = vector.load %arg11[%c0, %c0_1] : memref<8x128xf32, #tpu.memory_space<vmem>>, vector<8x128xf32>
    %c0_2 = arith.constant 0 : index
    %c0_3 = arith.constant 0 : index
    %4 = vector.load %arg6[%c0_2, %c0_3] : memref<128x512xf32, #tpu.memory_space<vmem>>, vector<128x512xf32>
    %cst = arith.constant dense<0.000000e+00> : vector<8x512xf32>
    %5 = tpu.matmul %3, %4, %cst {dimension_numbers = #tpu.dot_dimension_numbers<[1], [0], [0], [1], [0, 0, 1, 1], [], []>} : vector<8x128xf32>, vector<128x512xf32>, vector<8x512xf32> -> vector<8x512xf32>
    %c0_4 = arith.constant 0 : index
    %c0_5 = arith.constant 0 : index
    %6 = vector.load %arg7[%c0_4, %c0_5] : memref<1x512xf32, #tpu.memory_space<vmem>>, vector<1x512xf32>
    %7 = vector.broadcast %6 : vector<1x512xf32> to vector<8x512xf32>
    %8 = arith.addf %5, %7 : vector<8x512xf32>
    %9 = vector.extract_strided_slice %8 {offsets = [0, 0], sizes = [8, 128], strides = [1, 1]} : vector<8x512xf32> to vector<8x128xf32>
    %10 = vector.extract_strided_slice %8 {offsets = [0, 128], sizes = [8, 384], strides = [1, 1]} : vector<8x512xf32> to vector<8x384xf32>
    %11 = vector.shape_cast %9 : vector<8x128xf32> to vector<1x8x128xf32>
    %c0_6 = arith.constant 0 : index
    %c0_7 = arith.constant 0 : index
    %c0_8 = arith.constant 0 : index
    %12 = vector.load %arg2[%c0_6, %c0_7, %c0_8] : memref<8x8x128xf32, #tpu.memory_space<vmem>>, vector<8x8x128xf32>
    %13 = vector.broadcast %11 : vector<1x8x128xf32> to vector<8x8x128xf32>
    %14 = arith.addf %13, %12 : vector<8x8x128xf32>
    %15 = math.tanh %14 : vector<8x8x128xf32>
    %c0_9 = arith.constant 0 : index
    %c0_10 = arith.constant 0 : index
    %16 = vector.load %arg8[%c0_9, %c0_10] : memref<1x128xf32, #tpu.memory_space<vmem>>, vector<1x128xf32>
    %17 = vector.shape_cast %16 : vector<1x128xf32> to vector<1x1x128xf32>
    %18 = vector.broadcast %17 : vector<1x1x128xf32> to vector<8x8x128xf32>
    %19 = arith.mulf %15, %18 : vector<8x8x128xf32>
    %cst_11 = arith.constant dense<0.000000e+00> : vector<8x8xf32>
    %20 = vector.multi_reduction <add>, %19, %cst_11 [2] : vector<8x8x128xf32> to vector<8x8xf32>
    %21 = vector.shape_cast %20 : vector<8x8xf32> to vector<8x8x1xf32>
    %c0_12 = arith.constant 0 : index
    %c0_13 = arith.constant 0 : index
    %c0_14 = arith.constant 0 : index
    %22 = vector.load %arg4[%c0_12, %c0_13, %c0_14] : memref<8x8x1xf32, #tpu.memory_space<vmem>>, vector<8x8x1xf32>
    %23 = arith.addf %21, %22 : vector<8x8x1xf32>
    %cst_15 = arith.constant dense<0xFF800000> : vector<8x1xf32>
    %24 = vector.multi_reduction <maximumf>, %23, %cst_15 [0] : vector<8x8x1xf32> to vector<8x1xf32>
    %25 = vector.shape_cast %24 : vector<8x1xf32> to vector<1x8x1xf32>
    %26 = vector.broadcast %25 : vector<1x8x1xf32> to vector<8x8x1xf32>
    %27 = arith.subf %23, %26 : vector<8x8x1xf32>
    %28 = math.exp %27 : vector<8x8x1xf32>
    %cst_16 = arith.constant dense<0.000000e+00> : vector<8x1xf32>
    %29 = vector.multi_reduction <add>, %28, %cst_16 [0] : vector<8x8x1xf32> to vector<8x1xf32>
    %30 = vector.shape_cast %29 : vector<8x1xf32> to vector<1x8x1xf32>
    %31 = tpu.reciprocal %30 {approx = true} : vector<1x8x1xf32> -> vector<1x8x1xf32>
    %32 = vector.broadcast %31 : vector<1x8x1xf32> to vector<8x8x1xf32>
    %33 = arith.mulf %28, %32 : vector<8x8x1xf32>
    %c0_17 = arith.constant 0 : index
    %c0_18 = arith.constant 0 : index
    %c0_19 = arith.constant 0 : index
    %34 = vector.load %arg3[%c0_17, %c0_18, %c0_19] : memref<8x8x128xf32, #tpu.memory_space<vmem>>, vector<8x8x128xf32>
    %35 = vector.broadcast %33 : vector<8x8x1xf32> to vector<8x8x128xf32>
    %36 = arith.mulf %35, %34 : vector<8x8x128xf32>
    %cst_20 = arith.constant dense<0.000000e+00> : vector<8x128xf32>
    %37 = vector.multi_reduction <add>, %36, %cst_20 [0] : vector<8x8x128xf32> to vector<8x128xf32>
    %c0_21 = arith.constant 0 : index
    %c0_22 = arith.constant 0 : index
    %c0_23 = arith.constant 0 : index
    %38 = vector.load %arg1[%c0_21, %c0_22, %c0_23] : memref<1x8x384xf32, #tpu.memory_space<vmem>>, vector<1x8x384xf32>
    %39 = vector.shape_cast %38 : vector<1x8x384xf32> to vector<8x384xf32>
    %c0_24 = arith.constant 0 : index
    %c0_25 = arith.constant 0 : index
    %40 = vector.load %arg9[%c0_24, %c0_25] : memref<128x384xf32, #tpu.memory_space<vmem>>, vector<128x384xf32>
    %cst_26 = arith.constant dense<0.000000e+00> : vector<8x384xf32>
    %41 = tpu.matmul %37, %40, %cst_26 {dimension_numbers = #tpu.dot_dimension_numbers<[1], [0], [0], [1], [0, 0, 1, 1], [], []>} : vector<8x128xf32>, vector<128x384xf32>, vector<8x384xf32> -> vector<8x384xf32>
    %42 = arith.addf %39, %41 : vector<8x384xf32>
    %43 = vector.extract_strided_slice %42 {offsets = [0, 0], sizes = [8, 128], strides = [1, 1]} : vector<8x384xf32> to vector<8x128xf32>
    %44 = vector.extract_strided_slice %10 {offsets = [0, 0], sizes = [8, 128], strides = [1, 1]} : vector<8x384xf32> to vector<8x128xf32>
    %45 = arith.addf %43, %44 : vector<8x128xf32>
    %46 = arith.negf %45 : vector<8x128xf32>
    %47 = math.exp %46 : vector<8x128xf32>
    %cst_27 = arith.constant 1.000000e+00 : f32
    %48 = vector.broadcast %cst_27 : f32 to vector<8x128xf32>
    %49 = arith.addf %48, %47 : vector<8x128xf32>
    %50 = arith.divf %48, %49 : vector<8x128xf32>
    %51 = vector.extract_strided_slice %42 {offsets = [0, 128], sizes = [8, 128], strides = [1, 1]} : vector<8x384xf32> to vector<8x128xf32>
    %52 = vector.extract_strided_slice %10 {offsets = [0, 128], sizes = [8, 128], strides = [1, 1]} : vector<8x384xf32> to vector<8x128xf32>
    %53 = arith.addf %51, %52 : vector<8x128xf32>
    %54 = arith.negf %53 : vector<8x128xf32>
    %55 = math.exp %54 : vector<8x128xf32>
    %cst_28 = arith.constant 1.000000e+00 : f32
    %56 = vector.broadcast %cst_28 : f32 to vector<8x128xf32>
    %57 = arith.addf %56, %55 : vector<8x128xf32>
    %58 = arith.divf %56, %57 : vector<8x128xf32>
    %59 = vector.extract_strided_slice %42 {offsets = [0, 256], sizes = [8, 128], strides = [1, 1]} : vector<8x384xf32> to vector<8x128xf32>
    %60 = vector.extract_strided_slice %10 {offsets = [0, 256], sizes = [8, 128], strides = [1, 1]} : vector<8x384xf32> to vector<8x128xf32>
    %61 = arith.mulf %50, %60 : vector<8x128xf32>
    %62 = arith.addf %59, %61 : vector<8x128xf32>
    %63 = math.tanh %62 : vector<8x128xf32>
    %cst_29 = arith.constant 1.000000e+00 : f32
    %64 = vector.broadcast %cst_29 : f32 to vector<8x128xf32>
    %65 = arith.subf %64, %58 : vector<8x128xf32>
    %66 = arith.mulf %65, %63 : vector<8x128xf32>
    %67 = arith.mulf %58, %3 : vector<8x128xf32>
    %68 = arith.addf %66, %67 : vector<8x128xf32>
    %c0_30 = arith.constant 0 : index
    %c0_31 = arith.constant 0 : index
    %69 = vector.load %arg11[%c0_30, %c0_31] : memref<8x128xf32, #tpu.memory_space<vmem>>, vector<8x128xf32>
    tpu.vector_store %arg11[%c0_30, %c0_31], %68 {strides = array<i32>} : memref<8x128xf32, #tpu.memory_space<vmem>>, vector<8x128xf32>,
    %70 = vector.shape_cast %68 : vector<8x128xf32> to vector<1x8x128xf32>
    %c0_32 = arith.constant 0 : index
    %c0_33 = arith.constant 0 : index
    %c0_34 = arith.constant 0 : index
    %71 = vector.load %arg10[%c0_32, %c0_33, %c0_34] : memref<1x8x128xf32, #tpu.memory_space<vmem>>, vector<1x8x128xf32>
    tpu.vector_store %arg10[%c0_32, %c0_33, %c0_34], %70 {strides = array<i32>} : memref<1x8x128xf32, #tpu.memory_space<vmem>>, vector<1x8x128xf32>,
    return
  }
  func.func @transform_0(%arg0: i32) -> (i32, i32, i32) {
    %c0_i32 = arith.constant 0 : i32
    %c0_i32_0 = arith.constant 0 : i32
    %c0_i32_1 = arith.constant 0 : i32
    return %arg0, %c0_i32, %c0_i32_0 : i32, i32, i32
  }
  func.func @transform_1(%arg0: i32) -> (i32, i32, i32) {
    %c0_i32 = arith.constant 0 : i32
    %c0_i32_0 = arith.constant 0 : i32
    %c0_i32_1 = arith.constant 0 : i32
    %c0_i32_2 = arith.constant 0 : i32
    return %c0_i32, %c0_i32_0, %c0_i32_1 : i32, i32, i32
  }
  func.func @transform_2(%arg0: i32) -> (i32, i32, i32) {
    %c0_i32 = arith.constant 0 : i32
    %c0_i32_0 = arith.constant 0 : i32
    %c0_i32_1 = arith.constant 0 : i32
    %c0_i32_2 = arith.constant 0 : i32
    return %c0_i32, %c0_i32_0, %c0_i32_1 : i32, i32, i32
  }
  func.func @transform_3(%arg0: i32) -> (i32, i32, i32) {
    %c0_i32 = arith.constant 0 : i32
    %c0_i32_0 = arith.constant 0 : i32
    %c0_i32_1 = arith.constant 0 : i32
    %c0_i32_2 = arith.constant 0 : i32
    return %c0_i32, %c0_i32_0, %c0_i32_1 : i32, i32, i32
  }
  func.func @transform_4(%arg0: i32) -> (i32, i32) {
    %c0_i32 = arith.constant 0 : i32
    %c0_i32_0 = arith.constant 0 : i32
    %c0_i32_1 = arith.constant 0 : i32
    return %c0_i32, %c0_i32_0 : i32, i32
  }
  func.func @transform_5(%arg0: i32) -> (i32, i32) {
    %c0_i32 = arith.constant 0 : i32
    %c0_i32_0 = arith.constant 0 : i32
    %c0_i32_1 = arith.constant 0 : i32
    return %c0_i32, %c0_i32_0 : i32, i32
  }
  func.func @transform_6(%arg0: i32) -> (i32, i32) {
    %c0_i32 = arith.constant 0 : i32
    %c0_i32_0 = arith.constant 0 : i32
    %c0_i32_1 = arith.constant 0 : i32
    return %c0_i32, %c0_i32_0 : i32, i32
  }
  func.func @transform_7(%arg0: i32) -> (i32, i32) {
    %c0_i32 = arith.constant 0 : i32
    %c0_i32_0 = arith.constant 0 : i32
    %c0_i32_1 = arith.constant 0 : i32
    return %c0_i32, %c0_i32_0 : i32, i32
  }
  func.func @transform_8(%arg0: i32) -> (i32, i32) {
    %c0_i32 = arith.constant 0 : i32
    %c0_i32_0 = arith.constant 0 : i32
    %c0_i32_1 = arith.constant 0 : i32
    return %c0_i32, %c0_i32_0 : i32, i32
  }
  func.func @transform_9(%arg0: i32) -> (i32, i32, i32) {
    %c0_i32 = arith.constant 0 : i32
    %c0_i32_0 = arith.constant 0 : i32
    %c0_i32_1 = arith.constant 0 : i32
    return %arg0, %c0_i32, %c0_i32_0 : i32, i32, i32
  }
}

</mosaic_0001>

<llo_original>
// kernel: tpu_custom_call.1
$region0: #{tpu_custom_call.1}
  #allocation0 [shape = 'u32[]', space=smem, size = 0x4, offset = 0x4, fixed_abs, tag = 'smem constant byte address 0x4 - core index']
  #allocation1 [shape = 'u32[144,128]{1,0:T(1,128)}', space=vmem, size = 0x12000, scoped, tag = 'internal scratch']
  #allocation2 [shape = 'f32[8,128]{1,0:T(8,128)}', space=vmem, size = 0x1000, scoped, tag = 'scratch operand']
  %s0 = inlined_call_operand.hbm [shape: f32[6,8,384], index: 0, kind: input, shape index: {}]
  %s1 = inlined_call_operand.hbm [shape: f32[8,8,128], index: 1, kind: input, shape index: {}]
  %s2 = inlined_call_operand.hbm [shape: f32[8,8,128], index: 2, kind: input, shape index: {}]
  %s3 = inlined_call_operand.hbm [shape: f32[8,8,1], index: 3, kind: input, shape index: {}]
  %s4 = inlined_call_operand.hbm [shape: f32[8,128], index: 4, kind: input, shape index: {}]
  %s5 = inlined_call_operand.hbm [shape: f32[128,512], index: 5, kind: input, shape index: {}]
  %s6 = inlined_call_operand.hbm [shape: f32[1,512], index: 6, kind: input, shape index: {}]
  %s7 = inlined_call_operand.hbm [shape: f32[1,128], index: 7, kind: input, shape index: {}]
  %s8 = inlined_call_operand.hbm [shape: f32[128,384], index: 8, kind: input, shape index: {}]
  %s9 = inlined_call_operand.hbm [shape: f32[6,8,128], index: 9, kind: output, shape index: {}]
  %s10 = sld [smem:[#allocation0]]
  $region109: #{tpu_custom_call.1} parent=0
    _
  %s12 = ssub.s32 1, %s10
  %s13 = scalar_select 0, %s12, %s10
  $region1: #{tpu_custom_call.1} parent=0
    #allocation3 [shape = 'u8[24576]{0}', space=vmem, size = 0x6000, scoped, tag = 'input window, operand 0']
    #allocation4 [shape = 's32[2]{0}', space=sflag, size = 0x8, scoped, tag = 'scoped memory for tpu_custom_call.1']
    #allocation5 [shape = 's32[2]{0}', space=sflag, size = 0x8, scoped, tag = 'scoped memory for tpu_custom_call.1']
    #allocation6 [shape = 'u8[32768]{0}', space=vmem, size = 0x8000, scoped, tag = 'input window, operand 1, single buffered']
    #allocation7 [shape = 's32[1]{0}', space=sflag, size = 0x4, scoped, tag = 'scoped memory for tpu_custom_call.1']
    #allocation8 [shape = 'u8[32768]{0}', space=vmem, size = 0x8000, scoped, tag = 'input window, operand 2, single buffered']
    #allocation9 [shape = 'u8[32768]{0}', space=vmem, size = 0x8000, scoped, tag = 'input window, operand 3, single buffered']
    #allocation10 [shape = 's32[1]{0}', space=sflag, size = 0x4, scoped, tag = 'scoped memory for tpu_custom_call.1']
    #allocation11 [shape = 'u8[4096]{0}', space=vmem, size = 0x1000, scoped, tag = 'input window, operand 4, single buffered']
    #allocation12 [shape = 'u8[262144]{0}', space=vmem, size = 0x40000, scoped, tag = 'input window, operand 5, single buffered']
    #allocation13 [shape = 's32[1]{0}', space=sflag, size = 0x4, scoped, tag = 'scoped memory for tpu_custom_call.1']
    #allocation14 [shape = 'u8[2048]{0}', space=vmem, size = 0x800, scoped, tag = 'input window, operand 6, single buffered']
    #allocation15 [shape = 'u8[512]{0}', space=vmem, size = 0x400, scoped, tag = 'input window, operand 7, single buffered']
    #allocation16 [shape = 's32[1]{0}', space=sflag, size = 0x4, scoped, tag = 'scoped memory for tpu_custom_call.1']
    #allocation17 [shape = 'u8[196608]{0}', space=vmem, size = 0x30000, scoped, tag = 'input window, operand 8, single buffered']
    #allocation18 [shape = 'u8[8192]{0}', space=vmem, size = 0x2000, scoped, tag = 'output window, operand 0']
    %14 = vsyncpa [#allocation4], 0
    %s15 = scalar_lea.sflag [#allocation4], 1
    %16 = vsyncpa %s15, 0
    %17 = vsyncpa [#allocation7], 0
    %18 = vsyncpa [#allocation10], 0
    %19 = vsyncpa [#allocation13], 0
    %20 = vsyncpa [#allocation16], 0
    %21 = vsyncpa [#allocation5], 0
    %s22 = scalar_lea.sflag [#allocation5], 1
    %23 = vsyncpa %s22, 0
    loop: start=0, step=1, limit=8
    $region2: #{tpu_custom_call.1} parent=1 // loop_pre_header
      _
    $region3: #{tpu_custom_call.1} parent=1 // loop_header
      %s25 = sphi 0, %s29
      %p26 = scmp.ge.s32.totalorder %s25, 8
      %s35 = sphi 0, %s37
      %s38 = sphi 0, %s35
      %s39 = sphi 0, %s38
      %s55 = sphi 0, %s39
      %s59 = sphi 0, %s59
      %s61 = sphi 0, %s59
      %s62 = sphi 0, %s61
      %s76 = sphi 0, %s62
      %s80 = sphi 0, %s80
      %s82 = sphi 0, %s80
      %s83 = sphi 0, %s82
      %s97 = sphi 0, %s83
      %s101 = sphi 0, %s101
      %s103 = sphi 0, %s101
      %s104 = sphi 0, %s103
      %s118 = sphi 0, %s104
      %s122 = sphi 0, %s122
      %s124 = sphi 0, %s122
      %s125 = sphi 0, %s124
      %s139 = sphi 0, %s125
      %s143 = sphi 0, %s143
      %s145 = sphi 0, %s143
      %s146 = sphi 0, %s145
      %s160 = sphi 0, %s146
      %s164 = sphi 0, %s164
      %s166 = sphi 0, %s164
      %s167 = sphi 0, %s166
      %s181 = sphi 0, %s167
      %s185 = sphi 0, %s185
      %s187 = sphi 0, %s185
      %s188 = sphi 0, %s187
      %s202 = sphi 0, %s188
      %s206 = sphi 0, %s206
      %s208 = sphi 0, %s206
      %s209 = sphi 0, %s208
      %s223 = sphi 0, %s209
      %s229 = sphi 0, %s231
      %s232 = sphi 0, %s229
      %s233 = sphi 0, %s232
      %s249 = sphi 0, %s233
    $region4: #{tpu_custom_call.1} parent=1 // loop_header_branch
      %28 = sbr.rel (%p26) target = $region8
    $region5: #{tpu_custom_call.1} parent=1 // loop_body
      %s30 = ssub.s32 %s25, 1
      %s31 = ssub.s32 %s25, 2
      %s32 = sadd.s32 %s25, 1
      %s33 = ssub.s32 %s25, %s32
      %p34 = scmp.eq.s32.totalorder %s33, 0
      %s36 = sadd.s32 %s35, 1
      %s37 = scalar_select %p34, %s35, %s36
      %p40 = pneg %p34
      %p41 = scmp.eq.s32.totalorder %s25, 5
      %p42 = por %p40, %p41
      %p43 = scmp.ne.s32.totalorder %s35, %s38
      %p44 = scmp.eq.s32.totalorder %s25, 0
      %p45 = por %p43, %p44
      %p46 = scmp.ne.s32.totalorder %s35, %s38
      %p47 = scmp.eq.s32.totalorder %s30, 5
      %p48 = por %p46, %p47
      %p49 = scmp.ne.s32.totalorder %s38, %s39
      %p50 = scmp.eq.s32.totalorder %s30, 0
      %p51 = por %p49, %p50
      %p52 = scmp.ne.s32.totalorder %s38, %s39
      %p53 = scmp.eq.s32.totalorder %s31, 5
      %p54 = por %p52, %p53
      %p56 = scmp.ne.s32.totalorder %s39, %s55
      %p57 = scmp.eq.s32.totalorder %s31, 0
      %p58 = por %p56, %p57
      %s60 = sadd.s32 %s59, 1
      %p63 = scmp.eq.s32.totalorder %s25, 5
      %p64 = scmp.ne.s32.totalorder %s59, %s61
      %p65 = scmp.eq.s32.totalorder %s25, 0
      %p66 = por %p64, %p65
      %p67 = scmp.ne.s32.totalorder %s59, %s61
      %p68 = scmp.eq.s32.totalorder %s30, 5
      %p69 = por %p67, %p68
      %p70 = scmp.ne.s32.totalorder %s61, %s62
      %p71 = scmp.eq.s32.totalorder %s30, 0
      %p72 = por %p70, %p71
      %p73 = scmp.ne.s32.totalorder %s61, %s62
      %p74 = scmp.eq.s32.totalorder %s31, 5
      %p75 = por %p73, %p74
      %p77 = scmp.ne.s32.totalorder %s62, %s76
      %p78 = scmp.eq.s32.totalorder %s31, 0
      %p79 = por %p77, %p78
      %s81 = sadd.s32 %s80, 1
      %p84 = scmp.eq.s32.totalorder %s25, 5
      %p85 = scmp.ne.s32.totalorder %s80, %s82
      %p86 = scmp.eq.s32.totalorder %s25, 0
      %p87 = por %p85, %p86
      %p88 = scmp.ne.s32.totalorder %s80, %s82
      %p89 = scmp.eq.s32.totalorder %s30, 5
      %p90 = por %p88, %p89
      %p91 = scmp.ne.s32.totalorder %s82, %s83
      %p92 = scmp.eq.s32.totalorder %s30, 0
      %p93 = por %p91, %p92
      %p94 = scmp.ne.s32.totalorder %s82, %s83
      %p95 = scmp.eq.s32.totalorder %s31, 5
      %p96 = por %p94, %p95
      %p98 = scmp.ne.s32.totalorder %s83, %s97
      %p99 = scmp.eq.s32.totalorder %s31, 0
      %p100 = por %p98, %p99
      %s102 = sadd.s32 %s101, 1
      %p105 = scmp.eq.s32.totalorder %s25, 5
      %p106 = scmp.ne.s32.totalorder %s101, %s103
      %p107 = scmp.eq.s32.totalorder %s25, 0
      %p108 = por %p106, %p107
      %p109 = scmp.ne.s32.totalorder %s101, %s103
      %p110 = scmp.eq.s32.totalorder %s30, 5
      %p111 = por %p109, %p110
      %p112 = scmp.ne.s32.totalorder %s103, %s104
      %p113 = scmp.eq.s32.totalorder %s30, 0
      %p114 = por %p112, %p113
      %p115 = scmp.ne.s32.totalorder %s103, %s104
      %p116 = scmp.eq.s32.totalorder %s31, 5
      %p117 = por %p115, %p116
      %p119 = scmp.ne.s32.totalorder %s104, %s118
      %p120 = scmp.eq.s32.totalorder %s31, 0
      %p121 = por %p119, %p120
      %s123 = sadd.s32 %s122, 1
      %p126 = scmp.eq.s32.totalorder %s25, 5
      %p127 = scmp.ne.s32.totalorder %s122, %s124
      %p128 = scmp.eq.s32.totalorder %s25, 0
      %p129 = por %p127, %p128
      %p130 = scmp.ne.s32.totalorder %s122, %s124
      %p131 = scmp.eq.s32.totalorder %s30, 5
      %p132 = por %p130, %p131
      %p133 = scmp.ne.s32.totalorder %s124, %s125
      %p134 = scmp.eq.s32.totalorder %s30, 0
      %p135 = por %p133, %p134
      %p136 = scmp.ne.s32.totalorder %s124, %s125
      %p137 = scmp.eq.s32.totalorder %s31, 5
      %p138 = por %p136, %p137
      %p140 = scmp.ne.s32.totalorder %s125, %s139
      %p141 = scmp.eq.s32.totalorder %s31, 0
      %p142 = por %p140, %p141
      %s144 = sadd.s32 %s143, 1
      %p147 = scmp.eq.s32.totalorder %s25, 5
      %p148 = scmp.ne.s32.totalorder %s143, %s145
      %p149 = scmp.eq.s32.totalorder %s25, 0
      %p150 = por %p148, %p149
      %p151 = scmp.ne.s32.totalorder %s143, %s145
      %p152 = scmp.eq.s32.totalorder %s30, 5
      %p153 = por %p151, %p152
      %p154 = scmp.ne.s32.totalorder %s145, %s146
      %p155 = scmp.eq.s32.totalorder %s30, 0
      %p156 = por %p154, %p155
      %p157 = scmp.ne.s32.totalorder %s145, %s146
      %p158 = scmp.eq.s32.totalorder %s31, 5
      %p159 = por %p157, %p158
      %p161 = scmp.ne.s32.totalorder %s146, %s160
      %p162 = scmp.eq.s32.totalorder %s31, 0
      %p163 = por %p161, %p162
      %s165 = sadd.s32 %s164, 1
      %p168 = scmp.eq.s32.totalorder %s25, 5
      %p169 = scmp.ne.s32.totalorder %s164, %s166
      %p170 = scmp.eq.s32.totalorder %s25, 0
      %p171 = por %p169, %p170
      %p172 = scmp.ne.s32.totalorder %s164, %s166
      %p173 = scmp.eq.s32.totalorder %s30, 5
      %p174 = por %p172, %p173
      %p175 = scmp.ne.s32.totalorder %s166, %s167
      %p176 = scmp.eq.s32.totalorder %s30, 0
      %p177 = por %p175, %p176
      %p178 = scmp.ne.s32.totalorder %s166, %s167
      %p179 = scmp.eq.s32.totalorder %s31, 5
      %p180 = por %p178, %p179
      %p182 = scmp.ne.s32.totalorder %s167, %s181
      %p183 = scmp.eq.s32.totalorder %s31, 0
      %p184 = por %p182, %p183
      %s186 = sadd.s32 %s185, 1
      %p189 = scmp.eq.s32.totalorder %s25, 5
      %p190 = scmp.ne.s32.totalorder %s185, %s187
      %p191 = scmp.eq.s32.totalorder %s25, 0
      %p192 = por %p190, %p191
      %p193 = scmp.ne.s32.totalorder %s185, %s187
      %p194 = scmp.eq.s32.totalorder %s30, 5
      %p195 = por %p193, %p194
      %p196 = scmp.ne.s32.totalorder %s187, %s188
      %p197 = scmp.eq.s32.totalorder %s30, 0
      %p198 = por %p196, %p197
      %p199 = scmp.ne.s32.totalorder %s187, %s188
      %p200 = scmp.eq.s32.totalorder %s31, 5
      %p201 = por %p199, %p200
      %p203 = scmp.ne.s32.totalorder %s188, %s202
      %p204 = scmp.eq.s32.totalorder %s31, 0
      %p205 = por %p203, %p204
      %s207 = sadd.s32 %s206, 1
      %p210 = scmp.eq.s32.totalorder %s25, 5
      %p211 = scmp.ne.s32.totalorder %s206, %s208
      %p212 = scmp.eq.s32.totalorder %s25, 0
      %p213 = por %p211, %p212
      %p214 = scmp.ne.s32.totalorder %s206, %s208
      %p215 = scmp.eq.s32.totalorder %s30, 5
      %p216 = por %p214, %p215
      %p217 = scmp.ne.s32.totalorder %s208, %s209
      %p218 = scmp.eq.s32.totalorder %s30, 0
      %p219 = por %p217, %p218
      %p220 = scmp.ne.s32.totalorder %s208, %s209
      %p221 = scmp.eq.s32.totalorder %s31, 5
      %p222 = por %p220, %p221
      %p224 = scmp.ne.s32.totalorder %s209, %s223
      %p225 = scmp.eq.s32.totalorder %s31, 0
      %p226 = por %p224, %p225
      %s227 = ssub.s32 %s25, %s32
      %p228 = scmp.eq.s32.totalorder %s227, 0
      %s230 = sadd.s32 %s229, 1
      %s231 = scalar_select %p228, %s229, %s230
      %p234 = pneg %p228
      %p235 = scmp.eq.s32.totalorder %s25, 5
      %p236 = por %p234, %p235
      %p237 = scmp.ne.s32.totalorder %s229, %s232
      %p238 = scmp.eq.s32.totalorder %s25, 0
      %p239 = por %p237, %p238
      %p240 = scmp.ne.s32.totalorder %s229, %s232
      %p241 = scmp.eq.s32.totalorder %s30, 5
      %p242 = por %p240, %p241
      %p243 = scmp.ne.s32.totalorder %s232, %s233
      %p244 = scmp.eq.s32.totalorder %s30, 0
      %p245 = por %p243, %p244
      %p246 = scmp.ne.s32.totalorder %s232, %s233
      %p247 = scmp.eq.s32.totalorder %s31, 5
      %p248 = por %p246, %p247
      %p250 = scmp.ne.s32.totalorder %s233, %s249
      %p251 = scmp.eq.s32.totalorder %s31, 0
      %p252 = por %p250, %p251
      %p253 = scmp.le.s32.totalorder 1, %s25
      %p254 = scmp.lt.s32.totalorder %s25, 7
      %p255 = pnand %p253, %p254
      %p256 = pneg %p255
      // Predicated region
      $region9: #{tpu_custom_call.1} parent=5 // pred_check
        _
      $region10: #{tpu_custom_call.1} parent=5 // pred_check_branch
        %258 = sbr.rel (%p255) target = $region12
      $region11: #{tpu_custom_call.1} parent=5 // pred_region
        %s259 = ssub.s32 %s25, 1
        // Predicated region
        $region13: #{tpu_custom_call.1} parent=11 // pred_check
          %p260 = pneg %p72
        $region14: #{tpu_custom_call.1} parent=11 // pred_check_branch
          %262 = sbr.rel (%p260) target = $region16
        $region15: #{tpu_custom_call.1} parent=11 // pred_region
          %s264 = ssub.s32 1024, 1024
          %265 = vsyncadd [#allocation7], %s264
          %s266 = sshll.u32 [#allocation6], 4
          %s267 = int_to_ptr.vmem [resolvable:$true] %s266
          %272 = dma.hbm_to_vmem [thread:$0]  %s1, 1024, %s267, [#allocation7], 128, 128, 8
        $region16: #{tpu_custom_call.1} parent=11 // pred_fallthru
          _
        // Predicated region
        $region17: #{tpu_custom_call.1} parent=11 // pred_check
          %p273 = pneg %p93
        $region18: #{tpu_custom_call.1} parent=11 // pred_check_branch
          %275 = sbr.rel (%p273) target = $region20
        $region19: #{tpu_custom_call.1} parent=11 // pred_region
          %s277 = ssub.s32 1024, 1024
          %278 = vsyncadd [#allocation7], %s277
          %s279 = sshll.u32 [#allocation8], 4
          %s280 = int_to_ptr.vmem [resolvable:$true] %s279
          %285 = dma.hbm_to_vmem [thread:$0]  %s2, 1024, %s280, [#allocation7], 128, 128, 8
        $region20: #{tpu_custom_call.1} parent=11 // pred_fallthru
          _
        // Predicated region
        $region21: #{tpu_custom_call.1} parent=11 // pred_check
          %p286 = pneg %p114
        $region22: #{tpu_custom_call.1} parent=11 // pred_check_branch
          %288 = sbr.rel (%p286) target = $region24
        $region23: #{tpu_custom_call.1} parent=11 // pred_region
          %s290 = ssub.s32 1024, 1024
          %291 = vsyncadd [#allocation10], %s290
          %s292 = sshll.u32 [#allocation9], 4
          %s293 = int_to_ptr.vmem [resolvable:$true] %s292
          %298 = dma.hbm_to_vmem [thread:$0]  %s3, 1024, %s293, [#allocation10], 128, 128, 8
        $region24: #{tpu_custom_call.1} parent=11 // pred_fallthru
          _
        // Predicated region
        $region25: #{tpu_custom_call.1} parent=11 // pred_check
          %p299 = pneg %p135
        $region26: #{tpu_custom_call.1} parent=11 // pred_check_branch
          %301 = sbr.rel (%p299) target = $region28
        $region27: #{tpu_custom_call.1} parent=11 // pred_region
          %s303 = ssub.s32 128, 128
          %304 = vsyncadd [#allocation10], %s303
          %s306 = sshll.u32 [#allocation11], 4
          %s307 = int_to_ptr.vmem [resolvable:$true] %s306
          %309 = dma.hbm_to_vmem [thread:$0]  %s4, 128, %s307, [#allocation10]
        $region28: #{tpu_custom_call.1} parent=11 // pred_fallthru
          _
        // Predicated region
        $region29: #{tpu_custom_call.1} parent=11 // pred_check
          %p310 = pneg %p156
        $region30: #{tpu_custom_call.1} parent=11 // pred_check_branch
          %312 = sbr.rel (%p310) target = $region32
        $region31: #{tpu_custom_call.1} parent=11 // pred_region
          %s314 = ssub.s32 8192, 8192
          %315 = vsyncadd [#allocation13], %s314
          %s316 = sshll.u32 [#allocation12], 4
          %s317 = int_to_ptr.vmem [resolvable:$true] %s316
          %322 = dma.hbm_to_vmem [thread:$0]  %s5, 8192, %s317, [#allocation13], 512, 512, 32
        $region32: #{tpu_custom_call.1} parent=11 // pred_fallthru
          _
        // Predicated region
        $region33: #{tpu_custom_call.1} parent=11 // pred_check
          %p323 = pneg %p177
        $region34: #{tpu_custom_call.1} parent=11 // pred_check_branch
          %325 = sbr.rel (%p323) target = $region36
        $region35: #{tpu_custom_call.1} parent=11 // pred_region
          %s327 = ssub.s32 64, 64
          %328 = vsyncadd [#allocation13], %s327
          %s330 = sshll.u32 [#allocation14], 4
          %s331 = int_to_ptr.vmem [resolvable:$true] %s330
          %333 = dma.hbm_to_vmem [thread:$0]  %s6, 64, %s331, [#allocation13]
        $region36: #{tpu_custom_call.1} parent=11 // pred_fallthru
          _
        // Predicated region
        $region37: #{tpu_custom_call.1} parent=11 // pred_check
          %p334 = pneg %p198
        $region38: #{tpu_custom_call.1} parent=11 // pred_check_branch
          %336 = sbr.rel (%p334) target = $region40
        $region39: #{tpu_custom_call.1} parent=11 // pred_region
          %s338 = ssub.s32 16, 16
          %339 = vsyncadd [#allocation16], %s338
          %s341 = sshll.u32 [#allocation15], 4
          %s342 = int_to_ptr.vmem [resolvable:$true] %s341
          %344 = dma.hbm_to_vmem [thread:$0]  %s7, 16, %s342, [#allocation16]
        $region40: #{tpu_custom_call.1} parent=11 // pred_fallthru
          _
        // Predicated region
        $region41: #{tpu_custom_call.1} parent=11 // pred_check
          %p345 = pneg %p219
        $region42: #{tpu_custom_call.1} parent=11 // pred_check_branch
          %347 = sbr.rel (%p345) target = $region44
        $region43: #{tpu_custom_call.1} parent=11 // pred_region
          %s349 = ssub.s32 6144, 6144
          %350 = vsyncadd [#allocation16], %s349
          %s351 = sshll.u32 [#allocation17], 4
          %s352 = int_to_ptr.vmem [resolvable:$true] %s351
          %357 = dma.hbm_to_vmem [thread:$0]  %s8, 6144, %s352, [#allocation16], 384, 384, 24
        $region44: #{tpu_custom_call.1} parent=11 // pred_fallthru
          _
      $region12: #{tpu_custom_call.1} parent=5 // pred_fallthru
        _
      %p358 = scmp.lt.s32.totalorder %s25, 6
      // Predicated region
      $region45: #{tpu_custom_call.1} parent=5 // pred_check
        %p359 = pneg %p358
      $region46: #{tpu_custom_call.1} parent=5 // pred_check_branch
        %361 = sbr.rel (%p359) target = $region48
      $region47: #{tpu_custom_call.1} parent=5 // pred_region
        // Predicated region
        $region49: #{tpu_custom_call.1} parent=47 // pred_check
          %p362 = pneg %p45
        $region50: #{tpu_custom_call.1} parent=47 // pred_check_branch
          %364 = sbr.rel (%p362) target = $region52
        $region51: #{tpu_custom_call.1} parent=47 // pred_region
          %s365 = sand.u32 %s35, 1
          %s366 = scalar_lea.sflag [#allocation4], %s365
          %s367 = sand.u32 %s35, 1
          %s368 = smul.addr %s367, 24
          %s369 = scalar_lea.vmem [#allocation3], %s368
          %s371 = ssub.s32 384, 384
          %372 = vsyncadd %s366, %s371
          %s373 = smul.addr %s25, 3
          %s374 = smul.addr %s373, 128
          %s375 = scalar_lea.hbm %s0, %s374
          %s377 = sshll.u32 %s369, 4
          %s378 = int_to_ptr.vmem [resolvable:$true] %s377
          %380 = dma.hbm_to_vmem [thread:$0]  %s375, 384, %s378, %s366
        $region52: #{tpu_custom_call.1} parent=47 // pred_fallthru
          _
      $region48: #{tpu_custom_call.1} parent=5 // pred_fallthru
        _
      %p381 = scmp.le.s32.totalorder 1, %s25
      %p382 = scmp.lt.s32.totalorder %s25, 7
      %p383 = pnand %p381, %p382
      %p384 = pneg %p383
      // Predicated region
      $region53: #{tpu_custom_call.1} parent=5 // pred_check
        _
      $region54: #{tpu_custom_call.1} parent=5 // pred_check_branch
        %386 = sbr.rel (%p383) target = $region56
      $region55: #{tpu_custom_call.1} parent=5 // pred_region
        %s387 = ssub.s32 %s25, 1
        %s388 = sand.u32 %s38, 1
        %s389 = scalar_lea.sflag [#allocation4], %s388
        %s390 = sand.u32 %s38, 1
        %s391 = smul.addr %s390, 24
        %s392 = scalar_lea.vmem [#allocation3], %s391
        // Predicated region
        $region57: #{tpu_custom_call.1} parent=55 // pred_check
          %p393 = pneg %p51
        $region58: #{tpu_custom_call.1} parent=55 // pred_check_branch
          %395 = sbr.rel (%p393) target = $region60
        $region59: #{tpu_custom_call.1} parent=55 // pred_region
          %396 = dma.done %s389, 384
        $region60: #{tpu_custom_call.1} parent=55 // pred_fallthru
          _
        // Predicated region
        $region61: #{tpu_custom_call.1} parent=55 // pred_check
          %p397 = pneg %p72
        $region62: #{tpu_custom_call.1} parent=55 // pred_check_branch
          %399 = sbr.rel (%p397) target = $region64
        $region63: #{tpu_custom_call.1} parent=55 // pred_region
          %400 = dma.done [#allocation7], 1024
        $region64: #{tpu_custom_call.1} parent=55 // pred_fallthru
          _
        // Predicated region
        $region65: #{tpu_custom_call.1} parent=55 // pred_check
          %p401 = pneg %p93
        $region66: #{tpu_custom_call.1} parent=55 // pred_check_branch
          %403 = sbr.rel (%p401) target = $region68
        $region67: #{tpu_custom_call.1} parent=55 // pred_region
          %404 = dma.done [#allocation7], 1024
        $region68: #{tpu_custom_call.1} parent=55 // pred_fallthru
          _
        // Predicated region
        $region69: #{tpu_custom_call.1} parent=55 // pred_check
          %p405 = pneg %p114
        $region70: #{tpu_custom_call.1} parent=55 // pred_check_branch
          %407 = sbr.rel (%p405) target = $region72
        $region71: #{tpu_custom_call.1} parent=55 // pred_region
          %408 = dma.done [#allocation10], 1024
        $region72: #{tpu_custom_call.1} parent=55 // pred_fallthru
          _
        // Predicated region
        $region73: #{tpu_custom_call.1} parent=55 // pred_check
          %p409 = pneg %p135
        $region74: #{tpu_custom_call.1} parent=55 // pred_check_branch
          %411 = sbr.rel (%p409) target = $region76
        $region75: #{tpu_custom_call.1} parent=55 // pred_region
          %412 = dma.done [#allocation10], 128
        $region76: #{tpu_custom_call.1} parent=55 // pred_fallthru
          _
        // Predicated region
        $region77: #{tpu_custom_call.1} parent=55 // pred_check
          %p413 = pneg %p156
        $region78: #{tpu_custom_call.1} parent=55 // pred_check_branch
          %415 = sbr.rel (%p413) target = $region80
        $region79: #{tpu_custom_call.1} parent=55 // pred_region
          %416 = dma.done [#allocation13], 8192
        $region80: #{tpu_custom_call.1} parent=55 // pred_fallthru
          _
        // Predicated region
        $region81: #{tpu_custom_call.1} parent=55 // pred_check
          %p417 = pneg %p177
        $region82: #{tpu_custom_call.1} parent=55 // pred_check_branch
          %419 = sbr.rel (%p417) target = $region84
        $region83: #{tpu_custom_call.1} parent=55 // pred_region
          %420 = dma.done [#allocation13], 64
        $region84: #{tpu_custom_call.1} parent=55 // pred_fallthru
          _
        // Predicated region
        $region85: #{tpu_custom_call.1} parent=55 // pred_check
          %p421 = pneg %p198
        $region86: #{tpu_custom_call.1} parent=55 // pred_check_branch
          %423 = sbr.rel (%p421) target = $region88
        $region87: #{tpu_custom_call.1} parent=55 // pred_region
          %424 = dma.done [#allocation16], 16
        $region88: #{tpu_custom_call.1} parent=55 // pred_fallthru
          _
        // Predicated region
        $region89: #{tpu_custom_call.1} parent=55 // pred_check
          %p425 = pneg %p219
        $region90: #{tpu_custom_call.1} parent=55 // pred_check_branch
          %427 = sbr.rel (%p425) target = $region92
        $region91: #{tpu_custom_call.1} parent=55 // pred_region
          %428 = dma.done [#allocation16], 6144
        $region92: #{tpu_custom_call.1} parent=55 // pred_fallthru
          _
        %s429 = sand.u32 %s38, 1
        %s430 = scalar_lea.sflag [#allocation4], %s429
        %s431 = sand.u32 %s38, 1
        %s432 = smul.addr %s431, 24
        %s433 = scalar_lea.vmem [#allocation3], %s432
        %p434 = pneg %p51
        %p435 = pneg %p48
        %p436 = pneg %p72
        %p437 = pneg %p69
        %p438 = pneg %p93
        %p439 = pneg %p90
        %p440 = pneg %p114
        %p441 = pneg %p111
        %p442 = pneg %p135
        %p443 = pneg %p132
        %p444 = pneg %p156
        %p445 = pneg %p153
        %p446 = pneg %p177
        %p447 = pneg %p174
        %p448 = pneg %p198
        %p449 = pneg %p195
        %p450 = pneg %p219
        %p451 = pneg %p216
        %p452 = pneg %p245
        %p453 = pneg %p242
        %s454 = sand.u32 %s232, 1
        %s455 = scalar_lea.sflag [#allocation5], %s454
        %s456 = sand.u32 %s232, 1
        %s457 = smul.addr %s456, 8
        %s458 = scalar_lea.vmem [#allocation18], %s457
        %p459 = scmp.eq.s32.totalorder %s30, 0
        // Predicated region
        $region93: #{tpu_custom_call.1} parent=55 // pred_check
          %p460 = pneg %p459
        $region94: #{tpu_custom_call.1} parent=55 // pred_check_branch
          %462 = sbr.rel (%p460) target = $region96
        $region95: #{tpu_custom_call.1} parent=55 // pred_region
          %v463 = vld [vmem:[#allocation11] sm:$0xff]
          %464 = vst [vmem:[#allocation2] sm:$0xff] %v463
        $region96: #{tpu_custom_call.1} parent=55 // pred_fallthru
          _
        %v465 = vld [vmem:[#allocation2] sm:$0xff]
        %v466 = vld [vmem:[#allocation12] sm:$0xff]
        %v467 = vld [vmem:[#allocation12 + $0x8] sm:$0xff]
        %v468 = vld [vmem:[#allocation12 + $0x10] sm:$0xff]
        %v469 = vld [vmem:[#allocation12 + $0x18] sm:$0xff]
        %v470 = vld [vmem:[#allocation12 + $0x20] sm:$0xff]
        %v471 = vld [vmem:[#allocation12 + $0x28] sm:$0xff]
        %v472 = vld [vmem:[#allocation12 + $0x30] sm:$0xff]
        %v473 = vld [vmem:[#allocation12 + $0x38] sm:$0xff]
        %v474 = vld [vmem:[#allocation12 + $0x40] sm:$0xff]
        %v475 = vld [vmem:[#allocation12 + $0x48] sm:$0xff]
        %v476 = vld [vmem:[#allocation12 + $0x50] sm:$0xff]
        %v477 = vld [vmem:[#allocation12 + $0x58] sm:$0xff]
        %v478 = vld [vmem:[#allocation12 + $0x60] sm:$0xff]
        %v479 = vld [vmem:[#allocation12 + $0x68] sm:$0xff]
        %v480 = vld [vmem:[#allocation12 + $0x70] sm:$0xff]
        %v481 = vld [vmem:[#allocation12 + $0x78] sm:$0xff]
        %v482 = vld [vmem:[#allocation12 + $0x80] sm:$0xff]
        %v483 = vld [vmem:[#allocation12 + $0x88] sm:$0xff]
        %v484 = vld [vmem:[#allocation12 + $0x90] sm:$0xff]
        %v485 = vld [vmem:[#allocation12 + $0x98] sm:$0xff]
        %v486 = vld [vmem:[#allocation12 + $0xa0] sm:$0xff]
        %v487 = vld [vmem:[#allocation12 + $0xa8] sm:$0xff]
        %v488 = vld [vmem:[#allocation12 + $0xb0] sm:$0xff]
        %v489 = vld [vmem:[#allocation12 + $0xb8] sm:$0xff]
        %v490 = vld [vmem:[#allocation12 + $0xc0] sm:$0xff]
        %v491 = vld [vmem:[#allocation12 + $0xc8] sm:$0xff]
        %v492 = vld [vmem:[#allocation12 + $0xd0] sm:$0xff]
        %v493 = vld [vmem:[#allocation12 + $0xd8] sm:$0xff]
        %v494 = vld [vmem:[#allocation12 + $0xe0] sm:$0xff]
        %v495 = vld [vmem:[#allocation12 + $0xe8] sm:$0xff]
        %v496 = vld [vmem:[#allocation12 + $0xf0] sm:$0xff]
        %v497 = vld [vmem:[#allocation12 + $0xf8] sm:$0xff]
        %v498 = vld [vmem:[#allocation12 + $0x100] sm:$0xff]
        %v499 = vld [vmem:[#allocation12 + $0x108] sm:$0xff]
        %v500 = vld [vmem:[#allocation12 + $0x110] sm:$0xff]
        %v501 = vld [vmem:[#allocation12 + $0x118] sm:$0xff]
        %v502 = vld [vmem:[#allocation12 + $0x120] sm:$0xff]
        %v503 = vld [vmem:[#allocation12 + $0x128] sm:$0xff]
        %v504 = vld [vmem:[#allocation12 + $0x130] sm:$0xff]
        %v505 = vld [vmem:[#allocation12 + $0x138] sm:$0xff]
        %v506 = vld [vmem:[#allocation12 + $0x140] sm:$0xff]
        %v507 = vld [vmem:[#allocation12 + $0x148] sm:$0xff]
        %v508 = vld [vmem:[#allocation12 + $0x150] sm:$0xff]
        %v509 = vld [vmem:[#allocation12 + $0x158] sm:$0xff]
        %v510 = vld [vmem:[#allocation12 + $0x160] sm:$0xff]
        %v511 = vld [vmem:[#allocation12 + $0x168] sm:$0xff]
        %v512 = vld [vmem:[#allocation12 + $0x170] sm:$0xff]
        %v513 = vld [vmem:[#allocation12 + $0x178] sm:$0xff]
        %v514 = vld [vmem:[#allocation12 + $0x180] sm:$0xff]
        %v515 = vld [vmem:[#allocation12 + $0x188] sm:$0xff]
        %v516 = vld [vmem:[#allocation12 + $0x190] sm:$0xff]
        %v517 = vld [vmem:[#allocation12 + $0x198] sm:$0xff]
        %v518 = vld [vmem:[#allocation12 + $0x1a0] sm:$0xff]
        %v519 = vld [vmem:[#allocation12 + $0x1a8] sm:$0xff]
        %v520 = vld [vmem:[#allocation12 + $0x1b0] sm:$0xff]
        %v521 = vld [vmem:[#allocation12 + $0x1b8] sm:$0xff]
        %v522 = vld [vmem:[#allocation12 + $0x1c0] sm:$0xff]
        %v523 = vld [vmem:[#allocation12 + $0x1c8] sm:$0xff]
        %v524 = vld [vmem:[#allocation12 + $0x1d0] sm:$0xff]
        %v525 = vld [vmem:[#allocation12 + $0x1d8] sm:$0xff]
        %v526 = vld [vmem:[#allocation12 + $0x1e0] sm:$0xff]
        %v527 = vld [vmem:[#allocation12 + $0x1e8] sm:$0xff]
        %v528 = vld [vmem:[#allocation12 + $0x1f0] sm:$0xff]
        %v529 = vld [vmem:[#allocation12 + $0x1f8] sm:$0xff]
        %v530 = vld [vmem:[#allocation14] sm:$0xf]
        %v532 = vlaneseq
        %v533 = vshrl.u32 %v532, 7
        %v534 = vsub.s32 0, %v533
        %v535 = vrot.slane %v530, %v534
        %v536 = vlaneseq
        %v537 = vshrl.u32 %v536, 7
        %v538 = vsub.s32 1, %v537
        %v539 = vrot.slane %v530, %v538
        %v540 = vlaneseq
        %v541 = vshrl.u32 %v540, 7
        %v542 = vsub.s32 2, %v541
        %v543 = vrot.slane %v530, %v542
        %v544 = vlaneseq
        %v545 = vshrl.u32 %v544, 7
        %v546 = vsub.s32 3, %v545
        %v547 = vrot.slane %v530, %v546
        %552 = vmatprep.subr.mxu0 %v467
        %553 = vmatpush1.msra.mxu0 %v466
        %554 = vmatprep.subr.mxu0 %v471
        %555 = vmatpush1.msra.mxu0 %v470
        %556 = vmatprep.subr.mxu0 %v475
        %557 = vmatpush1.msra.mxu0 %v474
        %558 = vmatprep.subr.mxu0 %v479
        %559 = vmatpush1.msra.mxu0 %v478
        %560 = vmatprep.subr.mxu0 %v483
        %561 = vmatpush1.msra.mxu0 %v482
        %562 = vmatprep.subr.mxu0 %v487
        %563 = vmatpush1.msra.mxu0 %v486
        %564 = vmatprep.subr.mxu0 %v491
        %565 = vmatpush1.msra.mxu0 %v490
        %566 = vmatprep.subr.mxu0 %v495
        %567 = vmatpush1.msra.mxu0 %v494
        %568 = vmatprep.subr.mxu0 %v499
        %569 = vmatpush1.msra.mxu0 %v498
        %570 = vmatprep.subr.mxu0 %v503
        %571 = vmatpush1.msra.mxu0 %v502
        %572 = vmatprep.subr.mxu0 %v507
        %573 = vmatpush1.msra.mxu0 %v506
        %574 = vmatprep.subr.mxu0 %v511
        %575 = vmatpush1.msra.mxu0 %v510
        %576 = vmatprep.subr.mxu0 %v515
        %577 = vmatpush1.msra.mxu0 %v514
        %578 = vmatprep.subr.mxu0 %v519
        %579 = vmatpush1.msra.mxu0 %v518
        %580 = vmatprep.subr.mxu0 %v523
        %581 = vmatpush1.msra.mxu0 %v522
        %582 = vmatprep.subr.mxu0 %v527
        %583 = vmatpush1.msra.mxu0 %v526
        %584 = vmatprep.subr.mxu0 0.0
        %585 = vmatpush1.msra.mxu0 0.0
        %586 = vmatprep.subr.mxu0 0.0
        %587 = vmatpush1.msra.mxu0 0.0
        %588 = vmatprep.subr.mxu0 0.0
        %589 = vmatpush1.msra.mxu0 0.0
        %590 = vmatprep.subr.mxu0 0.0
        %591 = vmatpush1.msra.mxu0 0.0
        %592 = vmatprep.subr.mxu0 0.0
        %593 = vmatpush1.msra.mxu0 0.0
        %594 = vmatprep.subr.mxu0 0.0
        %595 = vmatpush1.msra.mxu0 0.0
        %596 = vmatprep.subr.mxu0 0.0
        %597 = vmatpush1.msra.mxu0 0.0
        %598 = vmatprep.subr.mxu0 0.0
        %599 = vmatpush1.msra.mxu0 0.0
        %600 = vmatprep.subr.mxu0 0.0
        %601 = vmatpush1.msra.mxu0 0.0
        %602 = vmatprep.subr.mxu0 0.0
        %603 = vmatpush1.msra.mxu0 0.0
        %604 = vmatprep.subr.mxu0 0.0
        %605 = vmatpush1.msra.mxu0 0.0
        %606 = vmatprep.subr.mxu0 0.0
        %607 = vmatpush1.msra.mxu0 0.0
        %608 = vmatprep.subr.mxu0 0.0
        %609 = vmatpush1.msra.mxu0 0.0
        %610 = vmatprep.subr.mxu0 0.0
        %611 = vmatpush1.msra.mxu0 0.0
        %612 = vmatprep.subr.mxu0 0.0
        %613 = vmatpush1.msra.mxu0 0.0
        %614 = vmatprep.subr.mxu0 0.0
        %615 = vmatpush1.msra.mxu0 0.0
        %616 = vmatprep.mubr.f32.mxu0 0.0
        %617 = vmatmul.mubr.f32.gmra.mrb[0].mxu0 %v465
        %v618 = vpop.f32.mrb[0].mxu0
        %v619 = vadd.f32 %v535, %v618
        %v620 = vpop.f32.mrb[0].mxu0
        %v621 = vadd.f32 %v539, %v620
        %622 = vdwg.mxu0
        %623 = vmatprep.subr.mxu0 %v469
        %624 = vmatpush1.msra.mxu0 %v468
        %625 = vmatprep.subr.mxu0 %v473
        %626 = vmatpush1.msra.mxu0 %v472
        %627 = vmatprep.subr.mxu0 %v477
        %628 = vmatpush1.msra.mxu0 %v476
        %629 = vmatprep.subr.mxu0 %v481
        %630 = vmatpush1.msra.mxu0 %v480
        %631 = vmatprep.subr.mxu0 %v485
        %632 = vmatpush1.msra.mxu0 %v484
        %633 = vmatprep.subr.mxu0 %v489
        %634 = vmatpush1.msra.mxu0 %v488
        %635 = vmatprep.subr.mxu0 %v493
        %636 = vmatpush1.msra.mxu0 %v492
        %637 = vmatprep.subr.mxu0 %v497
        %638 = vmatpush1.msra.mxu0 %v496
        %639 = vmatprep.subr.mxu0 %v501
        %640 = vmatpush1.msra.mxu0 %v500
        %641 = vmatprep.subr.mxu0 %v505
        %642 = vmatpush1.msra.mxu0 %v504
        %643 = vmatprep.subr.mxu0 %v509
        %644 = vmatpush1.msra.mxu0 %v508
        %645 = vmatprep.subr.mxu0 %v513
        %646 = vmatpush1.msra.mxu0 %v512
        %647 = vmatprep.subr.mxu0 %v517
        %648 = vmatpush1.msra.mxu0 %v516
        %649 = vmatprep.subr.mxu0 %v521
        %650 = vmatpush1.msra.mxu0 %v520
        %651 = vmatprep.subr.mxu0 %v525
        %652 = vmatpush1.msra.mxu0 %v524
        %653 = vmatprep.subr.mxu0 %v529
        %654 = vmatpush1.msra.mxu0 %v528
        %655 = vmatprep.subr.mxu0 0.0
        %656 = vmatpush1.msra.mxu0 0.0
        %657 = vmatprep.subr.mxu0 0.0
        %658 = vmatpush1.msra.mxu0 0.0
        %659 = vmatprep.subr.mxu0 0.0
        %660 = vmatpush1.msra.mxu0 0.0
        %661 = vmatprep.subr.mxu0 0.0
        %662 = vmatpush1.msra.mxu0 0.0
        %663 = vmatprep.subr.mxu0 0.0
        %664 = vmatpush1.msra.mxu0 0.0
        %665 = vmatprep.subr.mxu0 0.0
        %666 = vmatpush1.msra.mxu0 0.0
        %667 = vmatprep.subr.mxu0 0.0
        %668 = vmatpush1.msra.mxu0 0.0
        %669 = vmatprep.subr.mxu0 0.0
        %670 = vmatpush1.msra.mxu0 0.0
        %671 = vmatprep.subr.mxu0 0.0
        %672 = vmatpush1.msra.mxu0 0.0
        %673 = vmatprep.subr.mxu0 0.0
        %674 = vmatpush1.msra.mxu0 0.0
        %675 = vmatprep.subr.mxu0 0.0
        %676 = vmatpush1.msra.mxu0 0.0
        %677 = vmatprep.subr.mxu0 0.0
        %678 = vmatpush1.msra.mxu0 0.0
        %679 = vmatprep.subr.mxu0 0.0
        %680 = vmatpush1.msra.mxu0 0.0
        %681 = vmatprep.subr.mxu0 0.0
        %682 = vmatpush1.msra.mxu0 0.0
        %683 = vmatprep.subr.mxu0 0.0
        %684 = vmatpush1.msra.mxu0 0.0
        %685 = vmatprep.subr.mxu0 0.0
        %686 = vmatpush1.msra.mxu0 0.0
        %687 = vmatprep.mubr.f32.mxu0 0.0
        %688 = vmatmul.mubr.f32.gmra.mrb[0].mxu0 %v465
        %v689 = vpop.f32.mrb[0].mxu0
        %v690 = vadd.f32 %v543, %v689
        %v691 = vpop.f32.mrb[0].mxu0
        %v692 = vadd.f32 %v547, %v691
        %693 = vdwg.mxu0
        %v694 = vld [vmem:[#allocation6] sm:$0xff]
        %v695 = vld [vmem:[#allocation6 + $0x8] sm:$0xff]
        %v696 = vld [vmem:[#allocation6 + $0x10] sm:$0xff]
        %v697 = vld [vmem:[#allocation6 + $0x18] sm:$0xff]
        %v698 = vld [vmem:[#allocation6 + $0x20] sm:$0xff]
        %v699 = vld [vmem:[#allocation6 + $0x28] sm:$0xff]
        %v700 = vld [vmem:[#allocation6 + $0x30] sm:$0xff]
        %v701 = vld [vmem:[#allocation6 + $0x38] sm:$0xff]
        %v702 = vadd.f32 %v619, %v694
        %v703 = vadd.f32 %v619, %v695
        %v704 = vadd.f32 %v619, %v696
        %v705 = vadd.f32 %v619, %v697
        %v706 = vadd.f32 %v619, %v698
        %v707 = vadd.f32 %v619, %v699
        %v708 = vadd.f32 %v619, %v700
        %v709 = vadd.f32 %v619, %v701
        %v710 = vtanh.pop %v702
        %v711 = vtanh.pop %v703
        %v712 = vtanh.pop %v704
        %v713 = vtanh.pop %v705
        %v714 = vtanh.pop %v706
        %v715 = vtanh.pop %v707
        %v716 = vtanh.pop %v708
        %v717 = vtanh.pop %v709
        %v718 = vld [vmem:[#allocation15] sm:$0x1]
        %v720 = vlaneseq
        %v721 = vshrl.u32 %v720, 7
        %v722 = vsub.s32 0, %v721
        %v723 = vrot.slane %v718, %v722
        %v725 = vmul.f32 %v710, %v723
        %v726 = vmul.f32 %v711, %v723
        %v727 = vmul.f32 %v712, %v723
        %v728 = vmul.f32 %v713, %v723
        %v729 = vmul.f32 %v714, %v723
        %v730 = vmul.f32 %v715, %v723
        %v731 = vmul.f32 %v716, %v723
        %v732 = vmul.f32 %v717, %v723
        %733 = vadd.xlane.f32.xlu0 %v725
        %v734 = vpop.xlane.xlu0 %733
        %735 = vadd.xlane.f32.xlu0 %v726
        %v736 = vpop.xlane.xlu0 %735
        %737 = vadd.xlane.f32.xlu0 %v727
        %v738 = vpop.xlane.xlu0 %737
        %739 = vadd.xlane.f32.xlu0 %v728
        %v740 = vpop.xlane.xlu0 %739
        %741 = vadd.xlane.f32.xlu0 %v729
        %v742 = vpop.xlane.xlu0 %741
        %743 = vadd.xlane.f32.xlu0 %v730
        %v744 = vpop.xlane.xlu0 %743
        %745 = vadd.xlane.f32.xlu0 %v731
        %v746 = vpop.xlane.xlu0 %745
        %747 = vadd.xlane.f32.xlu0 %v732
        %v748 = vpop.xlane.xlu0 %747
        %v749 = vld [vmem:[#allocation9] sm:$0xff]
        %v750 = vld [vmem:[#allocation9 + $0x8] sm:$0xff]
        %v751 = vld [vmem:[#allocation9 + $0x10] sm:$0xff]
        %v752 = vld [vmem:[#allocation9 + $0x18] sm:$0xff]
        %v753 = vld [vmem:[#allocation9 + $0x20] sm:$0xff]
        %v754 = vld [vmem:[#allocation9 + $0x28] sm:$0xff]
        %v755 = vld [vmem:[#allocation9 + $0x30] sm:$0xff]
        %v756 = vld [vmem:[#allocation9 + $0x38] sm:$0xff]
        %v757 = vadd.f32 %v734, %v749
        %v758 = vadd.f32 %v736, %v750
        %v759 = vadd.f32 %v738, %v751
        %v760 = vadd.f32 %v740, %v752
        %v761 = vadd.f32 %v742, %v753
        %v762 = vadd.f32 %v744, %v754
        %v763 = vadd.f32 %v746, %v755
        %v764 = vadd.f32 %v748, %v756
        %vm765 = vcmask 7168
        %v766 = vsel %vm765, %v757, -inf
        %v767 = vsel %vm765, %v758, -inf
        %v768 = vsel %vm765, %v759, -inf
        %v769 = vsel %vm765, %v760, -inf
        %v770 = vsel %vm765, %v761, -inf
        %v771 = vmax.f32 %v766, %v770
        %v772 = vsel %vm765, %v762, -inf
        %v773 = vmax.f32 %v767, %v772
        %v774 = vsel %vm765, %v763, -inf
        %v775 = vmax.f32 %v768, %v774
        %v776 = vsel %vm765, %v764, -inf
        %v777 = vmax.f32 %v769, %v776
        %v778 = vmax.f32 %v771, %v773
        %v779 = vmax.f32 %v775, %v777
        %v780 = vmax.f32 %v778, %v779
        %v781 = vsub.f32 %v757, %v780
        %v782 = vsub.f32 %v758, %v780
        %v783 = vsub.f32 %v759, %v780
        %v784 = vsub.f32 %v760, %v780
        %v785 = vsub.f32 %v761, %v780
        %v786 = vsub.f32 %v762, %v780
        %v787 = vsub.f32 %v763, %v780
        %v788 = vsub.f32 %v764, %v780
        %v789 = vmul.f32 %v781, 1.442695
        %v790 = vpow.pop %v789
        %v791 = vmul.f32 %v782, 1.442695
        %v792 = vpow.pop %v791
        %v793 = vmul.f32 %v783, 1.442695
        %v794 = vpow.pop %v793
        %v795 = vmul.f32 %v784, 1.442695
        %v796 = vpow.pop %v795
        %v797 = vmul.f32 %v785, 1.442695
        %v798 = vpow.pop %v797
        %v799 = vmul.f32 %v786, 1.442695
        %v800 = vpow.pop %v799
        %v801 = vmul.f32 %v787, 1.442695
        %v802 = vpow.pop %v801
        %v803 = vmul.f32 %v788, 1.442695
        %v804 = vpow.pop %v803
        %v805 = vsel %vm765, %v790, 0.0
        %v806 = vsel %vm765, %v792, 0.0
        %v807 = vadd.f32 %v805, %v806
        %v808 = vsel %vm765, %v794, 0.0
        %v809 = vadd.f32 %v807, %v808
        %v810 = vsel %vm765, %v796, 0.0
        %v811 = vadd.f32 %v809, %v810
        %v812 = vsel %vm765, %v798, 0.0
        %v813 = vadd.f32 %v811, %v812
        %v814 = vsel %vm765, %v800, 0.0
        %v815 = vadd.f32 %v813, %v814
        %v816 = vsel %vm765, %v802, 0.0
        %v817 = vadd.f32 %v815, %v816
        %v818 = vsel %vm765, %v804, 0.0
        %v819 = vadd.f32 %v817, %v818
        %v820 = vrcp.pop %v819
        %v821 = vmul.f32 %v790, %v820
        %v822 = vmul.f32 %v792, %v820
        %v823 = vmul.f32 %v794, %v820
        %v824 = vmul.f32 %v796, %v820
        %v825 = vmul.f32 %v798, %v820
        %v826 = vmul.f32 %v800, %v820
        %v827 = vmul.f32 %v802, %v820
        %v828 = vmul.f32 %v804, %v820
        %v829 = vld [vmem:[#allocation8] sm:$0xff]
        %v830 = vld [vmem:[#allocation8 + $0x8] sm:$0xff]
        %v831 = vld [vmem:[#allocation8 + $0x10] sm:$0xff]
        %v832 = vld [vmem:[#allocation8 + $0x18] sm:$0xff]
        %v833 = vld [vmem:[#allocation8 + $0x20] sm:$0xff]
        %v834 = vld [vmem:[#allocation8 + $0x28] sm:$0xff]
        %v835 = vld [vmem:[#allocation8 + $0x30] sm:$0xff]
        %v836 = vld [vmem:[#allocation8 + $0x38] sm:$0xff]
        %838 = vset.pattern.permute.xlu0 0
        %839 = vperm.xlu0 %838, %v821
        %v840 = vpop.permute.xlu0 %839
        %843 = vset.pattern.permute.xlu0 0
        %844 = vperm.xlu0 %843, %v822
        %v845 = vpop.permute.xlu0 %844
        %848 = vset.pattern.permute.xlu0 0
        %849 = vperm.xlu0 %848, %v823
        %v850 = vpop.permute.xlu0 %849
        %853 = vset.pattern.permute.xlu0 0
        %854 = vperm.xlu0 %853, %v824
        %v855 = vpop.permute.xlu0 %854
        %858 = vset.pattern.permute.xlu0 0
        %859 = vperm.xlu0 %858, %v825
        %v860 = vpop.permute.xlu0 %859
        %863 = vset.pattern.permute.xlu0 0
        %864 = vperm.xlu0 %863, %v826
        %v865 = vpop.permute.xlu0 %864
        %868 = vset.pattern.permute.xlu0 0
        %869 = vperm.xlu0 %868, %v827
        %v870 = vpop.permute.xlu0 %869
        %873 = vset.pattern.permute.xlu0 0
        %874 = vperm.xlu0 %873, %v828
        %v875 = vpop.permute.xlu0 %874
        %v877 = vmul.f32 %v840, %v829
        %v878 = vmul.f32 %v845, %v830
        %v879 = vmul.f32 %v850, %v831
        %v880 = vmul.f32 %v855, %v832
        %v881 = vmul.f32 %v860, %v833
        %v882 = vmul.f32 %v865, %v834
        %v883 = vmul.f32 %v870, %v835
        %v884 = vmul.f32 %v875, %v836
        %v885 = vadd.f32 %v877, %v878
        %v886 = vadd.f32 %v885, %v879
        %v887 = vadd.f32 %v886, %v880
        %v888 = vadd.f32 %v887, %v881
        %v889 = vadd.f32 %v888, %v882
        %v890 = vadd.f32 %v889, %v883
        %v891 = vadd.f32 %v890, %v884
        %v892 = vld [vmem:[%s392] sm:$0xff]
        %v893 = vld [vmem:[%s392 + $0x8] sm:$0xff]
        %v894 = vld [vmem:[%s392 + $0x10] sm:$0xff]
        %v895 = vld [vmem:[#allocation17] sm:$0xff]
        %v896 = vld [vmem:[#allocation17 + $0x8] sm:$0xff]
        %v897 = vld [vmem:[#allocation17 + $0x10] sm:$0xff]
        %v898 = vld [vmem:[#allocation17 + $0x18] sm:$0xff]
        %v899 = vld [vmem:[#allocation17 + $0x20] sm:$0xff]
        %v900 = vld [vmem:[#allocation17 + $0x28] sm:$0xff]
        %v901 = vld [vmem:[#allocation17 + $0x30] sm:$0xff]
        %v902 = vld [vmem:[#allocation17 + $0x38] sm:$0xff]
        %v903 = vld [vmem:[#allocation17 + $0x40] sm:$0xff]
        %v904 = vld [vmem:[#allocation17 + $0x48] sm:$0xff]
        %v905 = vld [vmem:[#allocation17 + $0x50] sm:$0xff]
        %v906 = vld [vmem:[#allocation17 + $0x58] sm:$0xff]
        %v907 = vld [vmem:[#allocation17 + $0x60] sm:$0xff]
        %v908 = vld [vmem:[#allocation17 + $0x68] sm:$0xff]
        %v909 = vld [vmem:[#allocation17 + $0x70] sm:$0xff]
        %v910 = vld [vmem:[#allocation17 + $0x78] sm:$0xff]
        %v911 = vld [vmem:[#allocation17 + $0x80] sm:$0xff]
        %v912 = vld [vmem:[#allocation17 + $0x88] sm:$0xff]
        %v913 = vld [vmem:[#allocation17 + $0x90] sm:$0xff]
        %v914 = vld [vmem:[#allocation17 + $0x98] sm:$0xff]
        %v915 = vld [vmem:[#allocation17 + $0xa0] sm:$0xff]
        %v916 = vld [vmem:[#allocation17 + $0xa8] sm:$0xff]
        %v917 = vld [vmem:[#allocation17 + $0xb0] sm:$0xff]
        %v918 = vld [vmem:[#allocation17 + $0xb8] sm:$0xff]
        %v919 = vld [vmem:[#allocation17 + $0xc0] sm:$0xff]
        %v920 = vld [vmem:[#allocation17 + $0xc8] sm:$0xff]
        %v921 = vld [vmem:[#allocation17 + $0xd0] sm:$0xff]
        %v922 = vld [vmem:[#allocation17 + $0xd8] sm:$0xff]
        %v923 = vld [vmem:[#allocation17 + $0xe0] sm:$0xff]
        %v924 = vld [vmem:[#allocation17 + $0xe8] sm:$0xff]
        %v925 = vld [vmem:[#allocation17 + $0xf0] sm:$0xff]
        %v926 = vld [vmem:[#allocation17 + $0xf8] sm:$0xff]
        %v927 = vld [vmem:[#allocation17 + $0x100] sm:$0xff]
        %v928 = vld [vmem:[#allocation17 + $0x108] sm:$0xff]
        %v929 = vld [vmem:[#allocation17 + $0x110] sm:$0xff]
        %v930 = vld [vmem:[#allocation17 + $0x118] sm:$0xff]
        %v931 = vld [vmem:[#allocation17 + $0x120] sm:$0xff]
        %v932 = vld [vmem:[#allocation17 + $0x128] sm:$0xff]
        %v933 = vld [vmem:[#allocation17 + $0x130] sm:$0xff]
        %v934 = vld [vmem:[#allocation17 + $0x138] sm:$0xff]
        %v935 = vld [vmem:[#allocation17 + $0x140] sm:$0xff]
        %v936 = vld [vmem:[#allocation17 + $0x148] sm:$0xff]
        %v937 = vld [vmem:[#allocation17 + $0x150] sm:$0xff]
        %v938 = vld [vmem:[#allocation17 + $0x158] sm:$0xff]
        %v939 = vld [vmem:[#allocation17 + $0x160] sm:$0xff]
        %v940 = vld [vmem:[#allocation17 + $0x168] sm:$0xff]
        %v941 = vld [vmem:[#allocation17 + $0x170] sm:$0xff]
        %v942 = vld [vmem:[#allocation17 + $0x178] sm:$0xff]
        %943 = vmatprep.subr.mxu0 %v896
        %944 = vmatpush1.msra.mxu0 %v895
        %945 = vmatprep.subr.mxu0 %v899
        %946 = vmatpush1.msra.mxu0 %v898
        %947 = vmatprep.subr.mxu0 %v902
        %948 = vmatpush1.msra.mxu0 %v901
        %949 = vmatprep.subr.mxu0 %v905
        %950 = vmatpush1.msra.mxu0 %v904
        %951 = vmatprep.subr.mxu0 %v908
        %952 = vmatpush1.msra.mxu0 %v907
        %953 = vmatprep.subr.mxu0 %v911
        %954 = vmatpush1.msra.mxu0 %v910
        %955 = vmatprep.subr.mxu0 %v914
        %956 = vmatpush1.msra.mxu0 %v913
        %957 = vmatprep.subr.mxu0 %v917
        %958 = vmatpush1.msra.mxu0 %v916
        %959 = vmatprep.subr.mxu0 %v920
        %960 = vmatpush1.msra.mxu0 %v919
        %961 = vmatprep.subr.mxu0 %v923
        %962 = vmatpush1.msra.mxu0 %v922
        %963 = vmatprep.subr.mxu0 %v926
        %964 = vmatpush1.msra.mxu0 %v925
        %965 = vmatprep.subr.mxu0 %v929
        %966 = vmatpush1.msra.mxu0 %v928
        %967 = vmatprep.subr.mxu0 %v932
        %968 = vmatpush1.msra.mxu0 %v931
        %969 = vmatprep.subr.mxu0 %v935
        %970 = vmatpush1.msra.mxu0 %v934
        %971 = vmatprep.subr.mxu0 %v938
        %972 = vmatpush1.msra.mxu0 %v937
        %973 = vmatprep.subr.mxu0 %v941
        %974 = vmatpush1.msra.mxu0 %v940
        %975 = vmatprep.subr.mxu0 0.0
        %976 = vmatpush1.msra.mxu0 0.0
        %977 = vmatprep.subr.mxu0 0.0
        %978 = vmatpush1.msra.mxu0 0.0
        %979 = vmatprep.subr.mxu0 0.0
        %980 = vmatpush1.msra.mxu0 0.0
        %981 = vmatprep.subr.mxu0 0.0
        %982 = vmatpush1.msra.mxu0 0.0
        %983 = vmatprep.subr.mxu0 0.0
        %984 = vmatpush1.msra.mxu0 0.0
        %985 = vmatprep.subr.mxu0 0.0
        %986 = vmatpush1.msra.mxu0 0.0
        %987 = vmatprep.subr.mxu0 0.0
        %988 = vmatpush1.msra.mxu0 0.0
        %989 = vmatprep.subr.mxu0 0.0
        %990 = vmatpush1.msra.mxu0 0.0
        %991 = vmatprep.subr.mxu0 0.0
        %992 = vmatpush1.msra.mxu0 0.0
        %993 = vmatprep.subr.mxu0 0.0
        %994 = vmatpush1.msra.mxu0 0.0
        %995 = vmatprep.subr.mxu0 0.0
        %996 = vmatpush1.msra.mxu0 0.0
        %997 = vmatprep.subr.mxu0 0.0
        %998 = vmatpush1.msra.mxu0 0.0
        %999 = vmatprep.subr.mxu0 0.0
        %1000 = vmatpush1.msra.mxu0 0.0
        %1001 = vmatprep.subr.mxu0 0.0
        %1002 = vmatpush1.msra.mxu0 0.0
        %1003 = vmatprep.subr.mxu0 0.0
        %1004 = vmatpush1.msra.mxu0 0.0
        %1005 = vmatprep.subr.mxu0 0.0
        %1006 = vmatpush1.msra.mxu0 0.0
        %1007 = vmatprep.mubr.f32.mxu0 0.0
        %1008 = vmatmul.mubr.f32.gmra.mrb[0].mxu0 %v891
        %v1009 = vpop.f32.mrb[0].mxu0
        %v1010 = vadd.f32 0.0, %v1009
        %v1011 = vpop.f32.mrb[0].mxu0
        %v1012 = vadd.f32 0.0, %v1011
        %1013 = vdwg.mxu0
        %1014 = vmatprep.subr.mxu0 0.0
        %1015 = vmatpush1.msra.mxu0 %v897
        %1016 = vmatprep.subr.mxu0 0.0
        %1017 = vmatpush1.msra.mxu0 %v900
        %1018 = vmatprep.subr.mxu0 0.0
        %1019 = vmatpush1.msra.mxu0 %v903
        %1020 = vmatprep.subr.mxu0 0.0
        %1021 = vmatpush1.msra.mxu0 %v906
        %1022 = vmatprep.subr.mxu0 0.0
        %1023 = vmatpush1.msra.mxu0 %v909
        %1024 = vmatprep.subr.mxu0 0.0
        %1025 = vmatpush1.msra.mxu0 %v912
        %1026 = vmatprep.subr.mxu0 0.0
        %1027 = vmatpush1.msra.mxu0 %v915
        %1028 = vmatprep.subr.mxu0 0.0
        %1029 = vmatpush1.msra.mxu0 %v918
        %1030 = vmatprep.subr.mxu0 0.0
        %1031 = vmatpush1.msra.mxu0 %v921
        %1032 = vmatprep.subr.mxu0 0.0
        %1033 = vmatpush1.msra.mxu0 %v924
        %1034 = vmatprep.subr.mxu0 0.0
        %1035 = vmatpush1.msra.mxu0 %v927
        %1036 = vmatprep.subr.mxu0 0.0
        %1037 = vmatpush1.msra.mxu0 %v930
        %1038 = vmatprep.subr.mxu0 0.0
        %1039 = vmatpush1.msra.mxu0 %v933
        %1040 = vmatprep.subr.mxu0 0.0
        %1041 = vmatpush1.msra.mxu0 %v936
        %1042 = vmatprep.subr.mxu0 0.0
        %1043 = vmatpush1.msra.mxu0 %v939
        %1044 = vmatprep.subr.mxu0 0.0
        %1045 = vmatpush1.msra.mxu0 %v942
        %1046 = vmatprep.subr.mxu0 0.0
        %1047 = vmatpush1.msra.mxu0 0.0
        %1048 = vmatprep.subr.mxu0 0.0
        %1049 = vmatpush1.msra.mxu0 0.0
        %1050 = vmatprep.subr.mxu0 0.0
        %1051 = vmatpush1.msra.mxu0 0.0
        %1052 = vmatprep.subr.mxu0 0.0
        %1053 = vmatpush1.msra.mxu0 0.0
        %1054 = vmatprep.subr.mxu0 0.0
        %1055 = vmatpush1.msra.mxu0 0.0
        %1056 = vmatprep.subr.mxu0 0.0
        %1057 = vmatpush1.msra.mxu0 0.0
        %1058 = vmatprep.subr.mxu0 0.0
        %1059 = vmatpush1.msra.mxu0 0.0
        %1060 = vmatprep.subr.mxu0 0.0
        %1061 = vmatpush1.msra.mxu0 0.0
        %1062 = vmatprep.subr.mxu0 0.0
        %1063 = vmatpush1.msra.mxu0 0.0
        %1064 = vmatprep.subr.mxu0 0.0
        %1065 = vmatpush1.msra.mxu0 0.0
        %1066 = vmatprep.subr.mxu0 0.0
        %1067 = vmatpush1.msra.mxu0 0.0
        %1068 = vmatprep.subr.mxu0 0.0
        %1069 = vmatpush1.msra.mxu0 0.0
        %1070 = vmatprep.subr.mxu0 0.0
        %1071 = vmatpush1.msra.mxu0 0.0
        %1072 = vmatprep.subr.mxu0 0.0
        %1073 = vmatpush1.msra.mxu0 0.0
        %1074 = vmatprep.subr.mxu0 0.0
        %1075 = vmatpush1.msra.mxu0 0.0
        %1076 = vmatprep.subr.mxu0 0.0
        %1077 = vmatpush1.msra.mxu0 0.0
        %1078 = vmatprep.mubr.f32.mxu0 0.0
        %1079 = vmatmul.mubr.f32.gmra.mrb[0].mxu0 %v891
        %v1080 = vpop.f32.mrb[0].mxu0
        %v1081 = vadd.f32 0.0, %v1080
        %v1082 = vpop.f32.mrb[0].mxu0
        %1083 = vdwg.mxu0
        %v1084 = vadd.f32 %v892, %v1010
        %v1085 = vadd.f32 %v893, %v1012
        %v1086 = vadd.f32 %v894, %v1081
        %v1087 = vadd.f32 %v1084, %v621
        %v1088 = vxor.u32 %v1087, 2147483648
        %v1089 = vmul.f32 %v1088, 1.442695
        %v1090 = vpow.pop %v1089
        %v1091 = vadd.f32 %v1090, 1.0
        %v1092 = vrcp.pop %v1091
        %v1093 = vmul.f32 1.0, %v1092
        %v1094 = vadd.f32 %v1085, %v690
        %v1095 = vxor.u32 %v1094, 2147483648
        %v1096 = vmul.f32 %v1095, 1.442695
        %v1097 = vpow.pop %v1096
        %v1098 = vadd.f32 %v1097, 1.0
        %v1099 = vrcp.pop %v1098
        %v1100 = vmul.f32 1.0, %v1099
        %v1101 = vmul.f32 %v1093, %v692
        %v1102 = vadd.f32 %v1086, %v1101
        %v1103 = vtanh.pop %v1102
        %v1104 = vsub.f32 1.0, %v1100
        %v1105 = vmul.f32 %v1104, %v1103
        %v1106 = vmul.f32 %v1100, %v465
        %v1107 = vadd.f32 %v1105, %v1106
        %1108 = vst [vmem:[#allocation2] sm:$0xff] %v1107
        %1109 = vst [vmem:[%s458] sm:$0xff] %v1107
        %s1110 = sand.u32 %s232, 1
        %s1111 = scalar_lea.sflag [#allocation5], %s1110
        %s1112 = sand.u32 %s232, 1
        %s1113 = smul.addr %s1112, 8
        %s1114 = scalar_lea.vmem [#allocation18], %s1113
        // Predicated region
        $region97: #{tpu_custom_call.1} parent=55 // pred_check
          %p1115 = pneg %p242
        $region98: #{tpu_custom_call.1} parent=55 // pred_check_branch
          %1117 = sbr.rel (%p1115) target = $region100
        $region99: #{tpu_custom_call.1} parent=55 // pred_region
          %s1119 = ssub.s32 128, 128
          %1120 = vsyncadd %s1111, %s1119
          %s1121 = smul.addr %s30, 128
          %s1122 = scalar_lea.hbm %s9, %s1121
          %s1124 = sshll.u32 %s1114, 4
          %s1125 = int_to_ptr.vmem [resolvable:$true] %s1124
          %1127 = dma.vmem_to_hbm [thread:$0]  %s1125, 128, %s1122, %s1111
        $region100: #{tpu_custom_call.1} parent=55 // pred_fallthru
          _
      $region56: #{tpu_custom_call.1} parent=5 // pred_fallthru
        _
      %p1128 = scmp.le.s32.totalorder 2, %s25
      // Predicated region
      $region101: #{tpu_custom_call.1} parent=5 // pred_check
        %p1129 = pneg %p1128
      $region102: #{tpu_custom_call.1} parent=5 // pred_check_branch
        %1131 = sbr.rel (%p1129) target = $region104
      $region103: #{tpu_custom_call.1} parent=5 // pred_region
        %s1132 = ssub.s32 %s25, 2
        // Predicated region
        $region105: #{tpu_custom_call.1} parent=103 // pred_check
          %p1133 = pneg %p248
        $region106: #{tpu_custom_call.1} parent=103 // pred_check_branch
          %1135 = sbr.rel (%p1133) target = $region108
        $region107: #{tpu_custom_call.1} parent=103 // pred_region
          %s1136 = sand.u32 %s233, 1
          %s1137 = scalar_lea.sflag [#allocation5], %s1136
          %s1138 = sand.u32 %s233, 1
          %s1139 = smul.addr %s1138, 8
          %s1140 = scalar_lea.vmem [#allocation18], %s1139
          %1141 = dma.done %s1137, 128
        $region108: #{tpu_custom_call.1} parent=103 // pred_fallthru
          _
      $region104: #{tpu_custom_call.1} parent=5 // pred_fallthru
        _
    $region6: #{tpu_custom_call.1} parent=1 // loop_footer
      %s29 = sadd.s32 1, %s25
    $region7: #{tpu_custom_call.1} parent=1 // loop_footer_branch
      %24 = sbr.rel target = $region3
    $region8: #{tpu_custom_call.1} parent=1 // loop_exit
      _
    %1142 = vsyncpa [#allocation4], 1
    %s1143 = scalar_lea.sflag [#allocation4], 1
    %1144 = vsyncpa %s1143, 1
    %1145 = vsyncpa [#allocation7], 1
    %1146 = vsyncpa [#allocation10], 1
    %1147 = vsyncpa [#allocation13], 1
    %1148 = vsyncpa [#allocation16], 1
    %1149 = vsyncpa [#allocation5], 1
    %s1150 = scalar_lea.sflag [#allocation5], 1
    %1151 = vsyncpa %s1150, 1

</llo_original>
